<compile_context>
chip_gen: v7x
topology: tpu7x:2x2x1
jax: 0.10.0
libtpu: 0.0.40
codegen_flags: <defaults>
</compile_context>

<pallas_src>
import functools

import jax
import jax.numpy as jnp
from jax.experimental import pallas as pl
from jax.experimental.pallas import tpu as pltpu


def _round_up(x, m):
    return ((x + m - 1) // m) * m


# ----------------------------------------------------------------------------- kernel
def fused_actor_critic_kernel(x_ref, w1_ref, b1_ref, w2_ref, w3_ref, out_ref, *,
                              action_size):
    mxu_dtype = w1_ref.dtype
    # Full f32 matmul precision on the f32 path; bf16 path uses the default.
    prec = jax.lax.Precision.HIGHEST if mxu_dtype == jnp.float32 else None

    # Layer 1: bias added explicitly; b1 also carries a constant-1 channel in lane 127
    # (relu(1) == 1) so layer-2/3 biases ride inside w2/w3 with no further adds.
    h = jnp.dot(x_ref[...], w1_ref[...],
                preferred_element_type=jnp.float32, precision=prec)
    h = jnp.maximum(h + b1_ref[...], 0.0)

    # Layers 2/3: block-diagonal packed (actor | critic) -> one MXU dispatch per layer
    # for both branches; biases come from the carrier lane.
    h = jnp.maximum(
        jnp.dot(h.astype(mxu_dtype), w2_ref[...],
                preferred_element_type=jnp.float32, precision=prec), 0.0)
    y = jnp.dot(h.astype(mxu_dtype), w3_ref[...],
                preferred_element_type=jnp.float32, precision=prec)

    # Columns [0, action_size): actor logits; column action_size: critic value; the
    # remaining lanes are exact zeros. Mask is a [1, npad] row broadcast over rows.
    col = jax.lax.broadcasted_iota(jnp.int32, (1, y.shape[-1]), 1)
    is_actor = col < action_size

    # Numerically stable softmax over the actor columns only. EXACT divide so the
    # probabilities sum to 1 (these feed Categorical sampling downstream).
    logits = jnp.where(is_actor, y, -jnp.inf)
    m = jnp.max(logits, axis=-1, keepdims=True)
    e = jnp.exp(logits - m)                      # masked lanes -> exp(-inf) = 0
    probs = e / jnp.sum(e, axis=-1, keepdims=True)

    # Single lane-dense [tile_b, 128] store: actor probs | critic value | zero pad.
    out_ref[...] = jnp.where(is_actor, probs, y).astype(out_ref.dtype)


# ----------------------------------------------------------------------------- packing
def pack_params(params, state_size, action_size, hidden=32,
                compute_dtype=jnp.float32):
    """One-time host-side packing of the 12 PyTorch-style (w, b) arrays into a
    block-diagonal fused layout with a lane-dense padded hidden width of 128.

      w1 [S,   128]  cols: [ actor h1 | critic h1 | 0-pad ]
      b1 [1,   128]  cols: [ b1a | b1c | 0-pad | 1.0 ]          (bias-carrier lane)
      w2 [128, 128]  block-diag actor/critic, row 127 = layer-2 biases, [127,127]=1
      w3 [128, 128]  cols [0,A) actor head, col A critic head, row 127 = layer-3 biases
    """
    H, H2, K2 = hidden, 2 * hidden, 128
    assert 2 * hidden < K2, "fused hidden must fit the 128-lane padded width"
    npad = _round_up(max(action_size + 1, 128), 128)
    carry = K2 - 1  # constant-1 bias-carrier channel

    w1 = jnp.zeros((state_size, K2), jnp.float32)
    w1 = w1.at[:, :H].set(params["w1a"])
    w1 = w1.at[:, H:H2].set(params["w1c"])

    b1 = jnp.zeros((1, K2), jnp.float32)
    b1 = b1.at[0, :H].set(params["b1a"][0])
    b1 = b1.at[0, H:H2].set(params["b1c"][0])
    b1 = b1.at[0, carry].set(1.0)               # relu(1) == 1 carries layer-2/3 biases

    w2 = jnp.zeros((K2, K2), jnp.float32)
    w2 = w2.at[:H, :H].set(params["w2a"])
    w2 = w2.at[H:H2, H:H2].set(params["w2c"])
    w2 = w2.at[carry, :H].set(params["b2a"][0])
    w2 = w2.at[carry, H:H2].set(params["b2c"][0])
    w2 = w2.at[carry, carry].set(1.0)

    w3 = jnp.zeros((K2, npad), jnp.float32)
    w3 = w3.at[:H, :action_size].set(params["w3a"])
    w3 = w3.at[H:H2, action_size:action_size + 1].set(params["w3c"])
    w3 = w3.at[carry, :action_size].set(params["b3a"][0])
    w3 = w3.at[carry, action_size].set(params["b3c"][0, 0])

    # MXU input dtype (bf16 recommended on v6e/v7x). b1 stays f32: it is added to the
    # f32 matmul result and all post-matmul elementwise work is kept f32 (v5e-safe).
    return (w1.astype(compute_dtype), b1,
            w2.astype(compute_dtype), w3.astype(compute_dtype))


# ----------------------------------------------------------------------------- wrapper
def _choose_batch_tiling(B, max_tile=1024):
    """Batch tile that (a) minimizes padding waste, (b) is a multiple of 8,
    (c) is capped at `max_tile` rows (working set stays ~1 MiB of VMEM), and
    (d) yields >= 2 grid tiles once B >= 512 so both v7x TensorCores get work."""
    if B <= 8:
        return 8, 1
    n_tiles = pl.cdiv(B, max_tile)
    if B >= 512:
        n_tiles = max(n_tiles, 2)
    tile_b = _round_up(pl.cdiv(B, n_tiles), 8)
    return tile_b, pl.cdiv(B, tile_b)


def actor_critic_forward(x, packed_weights, action_size):
    """x: [B, state_size]. packed_weights: (w1, b1, w2, w3) from pack_params.
    Returns (actor_probs [B, action_size], critic_value [B, 1]) in f32."""
    w1, b1, w2, w3 = packed_weights
    B, S = x.shape
    npad = w3.shape[1]

    tile_b, grid_b = _choose_batch_tiling(B)
    b_pad = tile_b * grid_b

    xk = x.astype(w1.dtype)            # bf16 cast at the boundary (no-op on f32 path)
    if b_pad != B:                     # pad only remainder rows (no concat pass over x)
        xk = jnp.pad(xk, ((0, b_pad - B), (0, 0)))

    kernel = functools.partial(fused_actor_critic_kernel, action_size=action_size)
    # Review note: for very large B the padded f32 [B,128] write stream dominates; a
    # bf16 out_shape (or a separate compact critic output) would halve it — kept f32
    # here so the critic value keeps full precision for the value loss.
    out = pl.pallas_call(
        kernel,
        out_shape=jax.ShapeDtypeStruct((b_pad, npad), jnp.float32),
        grid=(grid_b,),
        in_specs=[
            pl.BlockSpec((tile_b, S), lambda i: (i, 0)),   # batch-tiled activations
            pl.BlockSpec(w1.shape, lambda i: (0, 0)),      # weights: DMA'd once,
            pl.BlockSpec(b1.shape, lambda i: (0, 0)),      # VMEM-resident across grid
            pl.BlockSpec(w2.shape, lambda i: (0, 0)),
            pl.BlockSpec(w3.shape, lambda i: (0, 0)),
        ],
        out_specs=pl.BlockSpec((tile_b, npad), lambda i: (i, 0)),
        compiler_params=pltpu.CompilerParams(
            dimension_semantics=("parallel",)),            # shard batch tiles over TCs
    )(xk, w1, b1, w2, w3)

    actor = out[:B, :action_size]
    critic = out[:B, action_size:action_size + 1]
    return actor, critic


# ----------------------------------------------------------------------------- init / reference
def init_params(key, state_size, action_size, hidden=32):
    """Deterministic synthetic init (PyTorch Linear shapes, stored transposed [in, out])."""
    ks = jax.random.split(key, 12)

    def lin(kw, kb, fan_in, fan_out):
        bound = 1.0 / jnp.sqrt(fan_in)
        w = jax.random.uniform(kw, (fan_in, fan_out), jnp.float32, -bound, bound)
        b = jax.random.uniform(kb, (1, fan_out), jnp.float32, -bound, bound)
        return w, b

    p = {}
    p["w1a"], p["b1a"] = lin(ks[0], ks[1], state_size, hidden)
    p["w2a"], p["b2a"] = lin(ks[2], ks[3], hidden, hidden)
    p["w3a"], p["b3a"] = lin(ks[4], ks[5], hidden, action_size)
    p["w1c"], p["b1c"] = lin(ks[6], ks[7], state_size, hidden)
    p["w2c"], p["b2c"] = lin(ks[8], ks[9], hidden, hidden)
    p["w3c"], p["b3c"] = lin(ks[10], ks[11], hidden, 1)
    return p


def reference_forward(x, p):
    def mlp(x, w1, b1, w2, b2, w3, b3):
        h = jnp.maximum(x @ w1 + b1, 0.0)
        h = jnp.maximum(h @ w2 + b2, 0.0)
        return h @ w3 + b3

    logits = mlp(x, p["w1a"], p["b1a"], p["w2a"], p["b2a"], p["w3a"], p["b3a"])
    actor = jax.nn.softmax(logits, axis=-1)
    critic = mlp(x, p["w1c"], p["b1c"], p["w2c"], p["b2c"], p["w3c"], p["b3c"])
    return actor, critic


# ----------------------------------------------------------------------------- main
if __name__ == "__main__":
    B, state_size, action_size = 8, 16, 4

    key = jax.random.PRNGKey(0)
    k_x, k_p = jax.random.split(key)
    x = jax.random.normal(k_x, (B, state_size), jnp.float32)
    params = init_params(k_p, state_size, action_size)

    actor_ref, critic_ref = reference_forward(x, params)

    # f32 path: numerically faithful to the PyTorch module.
    packed_f32 = pack_params(params, state_size, action_size,
                             compute_dtype=jnp.float32)
    actor, critic = actor_critic_forward(x, packed_f32, action_size)
    jax.block_until_ready((actor, critic))
    assert actor.shape == (B, action_size) and critic.shape == (B, 1)
    assert jnp.allclose(actor, actor_ref, atol=1e-4, rtol=1e-4)
    assert jnp.allclose(critic, critic_ref, atol=1e-4, rtol=1e-4)
    assert jnp.allclose(jnp.sum(actor, axis=-1), 1.0, atol=1e-4)  # exact-divide softmax

    # bf16 MXU path (review: near-native MXU rate on v6e/v7x, half the input DMA);
    # accumulation, softmax and critic stay f32, so only input rounding differs.
    packed_bf16 = pack_params(params, state_size, action_size,
                              compute_dtype=jnp.bfloat16)
    actor_bf, critic_bf = actor_critic_forward(x, packed_bf16, action_size)
    jax.block_until_ready((actor_bf, critic_bf))
    assert jnp.allclose(actor_bf, actor_ref, atol=3e-2, rtol=3e-2)
    assert jnp.allclose(critic_bf, critic_ref, atol=3e-2, rtol=3e-2)
    assert jnp.allclose(jnp.sum(actor_bf, axis=-1), 1.0, atol=1e-4)

    # TODO(synk): saved_actions / rewards buffers and Categorical action sampling are
    # host-side RL bookkeeping, not part of the forward pass, so not implemented here.
    print("KERNEL_OK")
</pallas_src>

<mosaic_0001>
module attributes {stable_mosaic.version = 11 : i64} {
  func.func @fused_actor_critic_kernel(%arg0: i32, %arg1: memref<8x16xf32, #tpu.memory_space<vmem>>, %arg2: memref<16x128xf32, #tpu.memory_space<vmem>>, %arg3: memref<1x128xf32, #tpu.memory_space<vmem>>, %arg4: memref<128x128xf32, #tpu.memory_space<vmem>>, %arg5: memref<128x128xf32, #tpu.memory_space<vmem>>, %arg6: memref<8x128xf32, #tpu.memory_space<vmem>>) attributes {dimension_semantics = [#tpu.dimension_semantics<parallel>], iteration_bounds = array<i64: 1>, scalar_prefetch = 0 : i64, scratch_operands = 0 : i64, tpu.core_type = #tpu.core_type<tc>, window_params = [{transform_indices = @transform_0, window_bounds = array<i64: 8, 16>}, {pipeline_mode = #tpu.pipeline_mode<synchronous>, transform_indices = @transform_1, window_bounds = array<i64: 16, 128>}, {pipeline_mode = #tpu.pipeline_mode<synchronous>, transform_indices = @transform_2, window_bounds = array<i64: 1, 128>}, {pipeline_mode = #tpu.pipeline_mode<synchronous>, transform_indices = @transform_3, window_bounds = array<i64: 128, 128>}, {pipeline_mode = #tpu.pipeline_mode<synchronous>, transform_indices = @transform_4, window_bounds = array<i64: 128, 128>}, {transform_indices = @transform_5, window_bounds = array<i64: 8, 128>}]} {
    %c0 = arith.constant 0 : index
    %c0_0 = arith.constant 0 : index
    %0 = vector.load %arg1[%c0, %c0_0] : memref<8x16xf32, #tpu.memory_space<vmem>>, vector<8x16xf32>
    %c0_1 = arith.constant 0 : index
    %c0_2 = arith.constant 0 : index
    %1 = vector.load %arg2[%c0_1, %c0_2] : memref<16x128xf32, #tpu.memory_space<vmem>>, vector<16x128xf32>
    %cst = arith.constant dense<0.000000e+00> : vector<8x128xf32>
    %2 = tpu.matmul %0, %1, %cst {dimension_numbers = #tpu.dot_dimension_numbers<[1], [0], [0], [1], [0, 0, 1, 1], [], []>, precision = #tpu.contract_precision<fp32>} : vector<8x16xf32>, vector<16x128xf32>, vector<8x128xf32> -> vector<8x128xf32>
    %c0_3 = arith.constant 0 : index
    %c0_4 = arith.constant 0 : index
    %3 = vector.load %arg3[%c0_3, %c0_4] : memref<1x128xf32, #tpu.memory_space<vmem>>, vector<1x128xf32>
    %4 = vector.broadcast %3 : vector<1x128xf32> to vector<8x128xf32>
    %5 = arith.addf %2, %4 : vector<8x128xf32>
    %cst_5 = arith.constant 0.000000e+00 : f32
    %6 = vector.broadcast %cst_5 : f32 to vector<8x128xf32>
    %7 = arith.maximumf %5, %6 : vector<8x128xf32>
    %c0_6 = arith.constant 0 : index
    %c0_7 = arith.constant 0 : index
    %8 = vector.load %arg4[%c0_6, %c0_7] : memref<128x128xf32, #tpu.memory_space<vmem>>, vector<128x128xf32>
    %cst_8 = arith.constant dense<0.000000e+00> : vector<8x128xf32>
    %9 = tpu.matmul %7, %8, %cst_8 {dimension_numbers = #tpu.dot_dimension_numbers<[1], [0], [0], [1], [0, 0, 1, 1], [], []>, precision = #tpu.contract_precision<fp32>} : vector<8x128xf32>, vector<128x128xf32>, vector<8x128xf32> -> vector<8x128xf32>
    %cst_9 = arith.constant 0.000000e+00 : f32
    %10 = vector.broadcast %cst_9 : f32 to vector<8x128xf32>
    %11 = arith.maximumf %9, %10 : vector<8x128xf32>
    %c0_10 = arith.constant 0 : index
    %c0_11 = arith.constant 0 : index
    %12 = vector.load %arg5[%c0_10, %c0_11] : memref<128x128xf32, #tpu.memory_space<vmem>>, vector<128x128xf32>
    %cst_12 = arith.constant dense<0.000000e+00> : vector<8x128xf32>
    %13 = tpu.matmul %11, %12, %cst_12 {dimension_numbers = #tpu.dot_dimension_numbers<[1], [0], [0], [1], [0, 0, 1, 1], [], []>, precision = #tpu.contract_precision<fp32>} : vector<8x128xf32>, vector<128x128xf32>, vector<8x128xf32> -> vector<8x128xf32>
    %14 = tpu.iota {dimensions = array<i32: 1>} : vector<1x128xi32>
    %c4_i32 = arith.constant 4 : i32
    %15 = vector.broadcast %c4_i32 : i32 to vector<1x128xi32>
    %16 = arith.cmpi slt, %14, %15 : vector<1x128xi32>
    %cst_13 = arith.constant 0xFF800000 : f32
    %17 = vector.shape_cast %16 : vector<1x128xi1> to vector<1x128xi1>
    %18 = vector.broadcast %17 : vector<1x128xi1> to vector<8x128xi1>
    %19 = vector.broadcast %cst_13 : f32 to vector<8x128xf32>
    %20 = arith.select %18, %13, %19 : vector<8x128xi1>, vector<8x128xf32>
    %cst_14 = arith.constant dense<0xFF800000> : vector<8xf32>
    %21 = vector.multi_reduction <maximumf>, %20, %cst_14 [1] : vector<8x128xf32> to vector<8xf32>
    %22 = vector.shape_cast %21 : vector<8xf32> to vector<8x1xf32>
    %23 = vector.broadcast %22 : vector<8x1xf32> to vector<8x128xf32>
    %24 = arith.subf %20, %23 : vector<8x128xf32>
    %25 = math.exp %24 : vector<8x128xf32>
    %cst_15 = arith.constant dense<0.000000e+00> : vector<8xf32>
    %26 = vector.multi_reduction <add>, %25, %cst_15 [1] : vector<8x128xf32> to vector<8xf32>
    %27 = vector.shape_cast %26 : vector<8xf32> to vector<8x1xf32>
    %28 = vector.broadcast %27 : vector<8x1xf32> to vector<8x128xf32>
    %29 = arith.divf %25, %28 : vector<8x128xf32>
    %30 = vector.shape_cast %16 : vector<1x128xi1> to vector<1x128xi1>
    %31 = vector.broadcast %30 : vector<1x128xi1> to vector<8x128xi1>
    %32 = arith.select %31, %29, %13 : vector<8x128xi1>, vector<8x128xf32>
    %c0_16 = arith.constant 0 : index
    %c0_17 = arith.constant 0 : index
    %33 = vector.load %arg6[%c0_16, %c0_17] : memref<8x128xf32, #tpu.memory_space<vmem>>, vector<8x128xf32>
    tpu.vector_store %arg6[%c0_16, %c0_17], %32 {strides = array<i32>} : memref<8x128xf32, #tpu.memory_space<vmem>>, vector<8x128xf32>,
    return
  }
  func.func @transform_0(%arg0: i32) -> (i32, i32) {
    %c0_i32 = arith.constant 0 : i32
    %c0_i32_0 = arith.constant 0 : i32
    return %arg0, %c0_i32 : i32, i32
  }
  func.func @transform_1(%arg0: i32) -> (i32, i32) {
    %c0_i32 = arith.constant 0 : i32
    %c0_i32_0 = arith.constant 0 : i32
    %c0_i32_1 = arith.constant 0 : i32
    return %c0_i32, %c0_i32_0 : i32, i32
  }
  func.func @transform_2(%arg0: i32) -> (i32, i32) {
    %c0_i32 = arith.constant 0 : i32
    %c0_i32_0 = arith.constant 0 : i32
    %c0_i32_1 = arith.constant 0 : i32
    return %c0_i32, %c0_i32_0 : i32, i32
  }
  func.func @transform_3(%arg0: i32) -> (i32, i32) {
    %c0_i32 = arith.constant 0 : i32
    %c0_i32_0 = arith.constant 0 : i32
    %c0_i32_1 = arith.constant 0 : i32
    return %c0_i32, %c0_i32_0 : i32, i32
  }
  func.func @transform_4(%arg0: i32) -> (i32, i32) {
    %c0_i32 = arith.constant 0 : i32
    %c0_i32_0 = arith.constant 0 : i32
    %c0_i32_1 = arith.constant 0 : i32
    return %c0_i32, %c0_i32_0 : i32, i32
  }
  func.func @transform_5(%arg0: i32) -> (i32, i32) {
    %c0_i32 = arith.constant 0 : i32
    %c0_i32_0 = arith.constant 0 : i32
    return %arg0, %c0_i32 : i32, i32
  }
}

</mosaic_0001>

<llo_original>
// kernel: tpu_custom_call.1
$region0: #{tpu_custom_call.1}
  #allocation0 [shape = 'u32[]', space=smem, size = 0x4, offset = 0x4, fixed_abs, tag = 'smem constant byte address 0x4 - core index']
  #allocation1 [shape = 'u32[144,128]{1,0:T(1,128)}', space=vmem, size = 0x12000, scoped, tag = 'internal scratch']
  %s0 = inlined_call_operand.hbm [shape: f32[8,16], index: 0, kind: input, shape index: {}]
  %s1 = inlined_call_operand.hbm [shape: f32[16,128], index: 1, kind: input, shape index: {}]
  %s2 = inlined_call_operand.vmem [shape: f32[1,128], index: 2, kind: input, shape index: {}]
  %s3 = inlined_call_operand.hbm [shape: f32[128,128], index: 3, kind: input, shape index: {}]
  %s4 = inlined_call_operand.hbm [shape: f32[128,128], index: 4, kind: input, shape index: {}]
  %s5 = inlined_call_operand.hbm [shape: f32[8,128], index: 5, kind: output, shape index: {}]
  %s6 = sld [smem:[#allocation0]]
  $region46: #{tpu_custom_call.1} parent=0
    _
  %s8 = ssub.s32 1, %s6
  %s9 = scalar_select 0, %s8, %s6
  $region1: #{tpu_custom_call.1} parent=0
    #allocation2 [shape = 'u8[4096]{0}', space=vmem, size = 0x1000, scoped, tag = 'input window, operand 0, single buffered']
    #allocation3 [shape = 's32[1]{0}', space=sflag, size = 0x4, scoped, tag = 'scoped memory for tpu_custom_call.1']
    #allocation4 [shape = 's32[1]{0}', space=sflag, size = 0x4, scoped, tag = 'scoped memory for tpu_custom_call.1']
    #allocation5 [shape = 'u8[8192]{0}', space=vmem, size = 0x2000, scoped, tag = 'input window, operand 1, single buffered']
    #allocation6 [shape = 's32[1]{0}', space=sflag, size = 0x4, scoped, tag = 'scoped memory for tpu_custom_call.1']
    #allocation7 [shape = 'u8[65536]{0}', space=vmem, size = 0x10000, scoped, tag = 'input window, operand 3, single buffered']
    #allocation8 [shape = 'u8[65536]{0}', space=vmem, size = 0x10000, scoped, tag = 'input window, operand 4, single buffered']
    #allocation9 [shape = 's32[1]{0}', space=sflag, size = 0x4, scoped, tag = 'scoped memory for tpu_custom_call.1']
    #allocation10 [shape = 'u8[4096]{0}', space=vmem, size = 0x1000, scoped, tag = 'output window, operand 0, single buffered']
    %10 = vsyncpa [#allocation3], 0
    %11 = vsyncpa [#allocation6], 0
    %12 = vsyncpa [#allocation9], 0
    %13 = vsyncpa [#allocation4], 0
    // Predicated region
    $region2: #{tpu_custom_call.1} parent=1 // pred_check
      _
    $region3: #{tpu_custom_call.1} parent=1 // pred_check_branch
      %15 = sbr.rel (0) target = $region5
    $region4: #{tpu_custom_call.1} parent=1 // pred_region
      %s17 = ssub.s32 128, 128
      %18 = vsyncadd [#allocation3], %s17
      %s20 = sshll.u32 [#allocation2], 4
      %s21 = int_to_ptr.vmem [resolvable:$true] %s20
      %23 = dma.hbm_to_vmem [thread:$0]  %s0, 128, %s21, [#allocation3]
    $region5: #{tpu_custom_call.1} parent=1 // pred_fallthru
      _
    // Predicated region
    $region6: #{tpu_custom_call.1} parent=1 // pred_check
      _
    $region7: #{tpu_custom_call.1} parent=1 // pred_check_branch
      %25 = sbr.rel (0) target = $region9
    $region8: #{tpu_custom_call.1} parent=1 // pred_region
      %s27 = ssub.s32 256, 256
      %28 = vsyncadd [#allocation6], %s27
      %s29 = sshll.u32 [#allocation5], 4
      %s30 = int_to_ptr.vmem [resolvable:$true] %s29
      %35 = dma.hbm_to_vmem [thread:$0]  %s1, 256, %s30, [#allocation6], 128, 128, 8
    $region9: #{tpu_custom_call.1} parent=1 // pred_fallthru
      _
    // Predicated region
    $region10: #{tpu_custom_call.1} parent=1 // pred_check
      _
    $region11: #{tpu_custom_call.1} parent=1 // pred_check_branch
      %37 = sbr.rel (0) target = $region13
    $region12: #{tpu_custom_call.1} parent=1 // pred_region
      _
    $region13: #{tpu_custom_call.1} parent=1 // pred_fallthru
      _
    // Predicated region
    $region14: #{tpu_custom_call.1} parent=1 // pred_check
      _
    $region15: #{tpu_custom_call.1} parent=1 // pred_check_branch
      %39 = sbr.rel (0) target = $region17
    $region16: #{tpu_custom_call.1} parent=1 // pred_region
      %s41 = ssub.s32 2048, 2048
      %42 = vsyncadd [#allocation6], %s41
      %s43 = sshll.u32 [#allocation7], 4
      %s44 = int_to_ptr.vmem [resolvable:$true] %s43
      %49 = dma.hbm_to_vmem [thread:$0]  %s3, 2048, %s44, [#allocation6], 128, 128, 8
    $region17: #{tpu_custom_call.1} parent=1 // pred_fallthru
      _
    // Predicated region
    $region18: #{tpu_custom_call.1} parent=1 // pred_check
      _
    $region19: #{tpu_custom_call.1} parent=1 // pred_check_branch
      %51 = sbr.rel (0) target = $region21
    $region20: #{tpu_custom_call.1} parent=1 // pred_region
      %s53 = ssub.s32 2048, 2048
      %54 = vsyncadd [#allocation9], %s53
      %s55 = sshll.u32 [#allocation8], 4
      %s56 = int_to_ptr.vmem [resolvable:$true] %s55
      %61 = dma.hbm_to_vmem [thread:$0]  %s4, 2048, %s56, [#allocation9], 128, 128, 8
    $region21: #{tpu_custom_call.1} parent=1 // pred_fallthru
      _
    // Predicated region
    $region22: #{tpu_custom_call.1} parent=1 // pred_check
      _
    $region23: #{tpu_custom_call.1} parent=1 // pred_check_branch
      %63 = sbr.rel (0) target = $region25
    $region24: #{tpu_custom_call.1} parent=1 // pred_region
      %64 = dma.done [#allocation3], 128
    $region25: #{tpu_custom_call.1} parent=1 // pred_fallthru
      _
    // Predicated region
    $region26: #{tpu_custom_call.1} parent=1 // pred_check
      _
    $region27: #{tpu_custom_call.1} parent=1 // pred_check_branch
      %66 = sbr.rel (0) target = $region29
    $region28: #{tpu_custom_call.1} parent=1 // pred_region
      %67 = dma.done [#allocation6], 256
    $region29: #{tpu_custom_call.1} parent=1 // pred_fallthru
      _
    // Predicated region
    $region30: #{tpu_custom_call.1} parent=1 // pred_check
      _
    $region31: #{tpu_custom_call.1} parent=1 // pred_check_branch
      %69 = sbr.rel (0) target = $region33
    $region32: #{tpu_custom_call.1} parent=1 // pred_region
      %70 = dma.done [#allocation6], 2048
    $region33: #{tpu_custom_call.1} parent=1 // pred_fallthru
      _
    // Predicated region
    $region34: #{tpu_custom_call.1} parent=1 // pred_check
      _
    $region35: #{tpu_custom_call.1} parent=1 // pred_check_branch
      %72 = sbr.rel (0) target = $region37
    $region36: #{tpu_custom_call.1} parent=1 // pred_region
      %73 = dma.done [#allocation9], 2048
    $region37: #{tpu_custom_call.1} parent=1 // pred_fallthru
      _
    %v74 = vld [vmem:[#allocation2] sm:$0xff]
    %v75 = vld [vmem:[#allocation5] sm:$0xff]
    %v76 = vld [vmem:[#allocation5 + $0x8] sm:$0xff]
    %v77 = vld [vmem:[%s2] sm:$0x1]
    %v79 = vlaneseq
    %v80 = vshrl.u32 %v79, 7
    %v81 = vsub.s32 0, %v80
    %v82 = vrot.slane %v77, %v81
    %vm84 = vcmask 130048
    %v86 = vsel %vm84, %v74, 0
    %88 = vmatprep.subr.mxu0 0.0
    %v89 = vand.u32 %v75, 4294901760
    %90 = vmatpush1.msra.mxu0 %v89
    %91 = vmatprep.subr.mxu0 0.0
    %v92 = vand.u32 %v76, 4294901760
    %93 = vmatpush1.msra.mxu0 %v92
    %94 = vmatprep.subr.mxu0 0.0
    %95 = vmatpush1.msra.mxu0 0.0
    %96 = vmatprep.subr.mxu0 0.0
    %97 = vmatpush1.msra.mxu0 0.0
    %98 = vmatprep.subr.mxu0 0.0
    %99 = vmatpush1.msra.mxu0 0.0
    %100 = vmatprep.subr.mxu0 0.0
    %101 = vmatpush1.msra.mxu0 0.0
    %102 = vmatprep.subr.mxu0 0.0
    %103 = vmatpush1.msra.mxu0 0.0
    %104 = vmatprep.subr.mxu0 0.0
    %105 = vmatpush1.msra.mxu0 0.0
    %106 = vmatprep.subr.mxu0 0.0
    %107 = vmatpush1.msra.mxu0 0.0
    %108 = vmatprep.subr.mxu0 0.0
    %109 = vmatpush1.msra.mxu0 0.0
    %110 = vmatprep.subr.mxu0 0.0
    %111 = vmatpush1.msra.mxu0 0.0
    %112 = vmatprep.subr.mxu0 0.0
    %113 = vmatpush1.msra.mxu0 0.0
    %114 = vmatprep.subr.mxu0 0.0
    %115 = vmatpush1.msra.mxu0 0.0
    %116 = vmatprep.subr.mxu0 0.0
    %117 = vmatpush1.msra.mxu0 0.0
    %118 = vmatprep.subr.mxu0 0.0
    %119 = vmatpush1.msra.mxu0 0.0
    %120 = vmatprep.subr.mxu0 0.0
    %121 = vmatpush1.msra.mxu0 0.0
    %122 = vmatprep.subr.mxu0 0.0
    %123 = vmatpush1.msra.mxu0 0.0
    %124 = vmatprep.subr.mxu0 0.0
    %125 = vmatpush1.msra.mxu0 0.0
    %126 = vmatprep.subr.mxu0 0.0
    %127 = vmatpush1.msra.mxu0 0.0
    %128 = vmatprep.subr.mxu0 0.0
    %129 = vmatpush1.msra.mxu0 0.0
    %130 = vmatprep.subr.mxu0 0.0
    %131 = vmatpush1.msra.mxu0 0.0
    %132 = vmatprep.subr.mxu0 0.0
    %133 = vmatpush1.msra.mxu0 0.0
    %134 = vmatprep.subr.mxu0 0.0
    %135 = vmatpush1.msra.mxu0 0.0
    %136 = vmatprep.subr.mxu0 0.0
    %137 = vmatpush1.msra.mxu0 0.0
    %138 = vmatprep.subr.mxu0 0.0
    %139 = vmatpush1.msra.mxu0 0.0
    %140 = vmatprep.subr.mxu0 0.0
    %141 = vmatpush1.msra.mxu0 0.0
    %142 = vmatprep.subr.mxu0 0.0
    %143 = vmatpush1.msra.mxu0 0.0
    %144 = vmatprep.subr.mxu0 0.0
    %145 = vmatpush1.msra.mxu0 0.0
    %146 = vmatprep.subr.mxu0 0.0
    %147 = vmatpush1.msra.mxu0 0.0
    %148 = vmatprep.subr.mxu0 0.0
    %149 = vmatpush1.msra.mxu0 0.0
    %150 = vmatprep.subr.mxu0 0.0
    %151 = vmatpush1.msra.mxu0 0.0
    %152 = vmatprep.subr.mxu0 0.0
    %153 = vmatpush1.msra.mxu0 0.0
    %154 = vmatprep.mubr.f32.mxu0 0.0
    %v155 = vand.u32 %v86, 4294901760
    %v156 = vsub.f32 %v86, %v155
    %v157 = vand.u32 %v156, 4294901760
    %v158 = vsub.f32 %v156, %v157
    %v159 = vand.u32 %v158, 4294901760
    %160 = vmatmul.mubr.f32.gmra.mrb[0].mxu0 %v159
    %v161 = vpop.f32.mrb[0].mxu0
    %v162 = vadd.f32 %v82, %v161
    %v163 = vpop.f32.mrb[0].mxu0
    %164 = vdwg.mxu0
    %165 = vmatprep.subr.mxu0 0.0
    %v166 = vand.u32 %v75, 4294901760
    %v167 = vsub.f32 %v75, %v166
    %v168 = vand.u32 %v167, 4294901760
    %v169 = vsub.f32 %v167, %v168
    %v170 = vand.u32 %v169, 4294901760
    %171 = vmatpush1.msra.mxu0 %v170
    %172 = vmatprep.subr.mxu0 0.0
    %v173 = vand.u32 %v76, 4294901760
    %v174 = vsub.f32 %v76, %v173
    %v175 = vand.u32 %v174, 4294901760
    %v176 = vsub.f32 %v174, %v175
    %v177 = vand.u32 %v176, 4294901760
    %178 = vmatpush1.msra.mxu0 %v177
    %179 = vmatprep.subr.mxu0 0.0
    %180 = vmatpush1.msra.mxu0 0.0
    %181 = vmatprep.subr.mxu0 0.0
    %182 = vmatpush1.msra.mxu0 0.0
    %183 = vmatprep.subr.mxu0 0.0
    %184 = vmatpush1.msra.mxu0 0.0
    %185 = vmatprep.subr.mxu0 0.0
    %186 = vmatpush1.msra.mxu0 0.0
    %187 = vmatprep.subr.mxu0 0.0
    %188 = vmatpush1.msra.mxu0 0.0
    %189 = vmatprep.subr.mxu0 0.0
    %190 = vmatpush1.msra.mxu0 0.0
    %191 = vmatprep.subr.mxu0 0.0
    %192 = vmatpush1.msra.mxu0 0.0
    %193 = vmatprep.subr.mxu0 0.0
    %194 = vmatpush1.msra.mxu0 0.0
    %195 = vmatprep.subr.mxu0 0.0
    %196 = vmatpush1.msra.mxu0 0.0
    %197 = vmatprep.subr.mxu0 0.0
    %198 = vmatpush1.msra.mxu0 0.0
    %199 = vmatprep.subr.mxu0 0.0
    %200 = vmatpush1.msra.mxu0 0.0
    %201 = vmatprep.subr.mxu0 0.0
    %202 = vmatpush1.msra.mxu0 0.0
    %203 = vmatprep.subr.mxu0 0.0
    %204 = vmatpush1.msra.mxu0 0.0
    %205 = vmatprep.subr.mxu0 0.0
    %206 = vmatpush1.msra.mxu0 0.0
    %207 = vmatprep.subr.mxu0 0.0
    %208 = vmatpush1.msra.mxu0 0.0
    %209 = vmatprep.subr.mxu0 0.0
    %210 = vmatpush1.msra.mxu0 0.0
    %211 = vmatprep.subr.mxu0 0.0
    %212 = vmatpush1.msra.mxu0 0.0
    %213 = vmatprep.subr.mxu0 0.0
    %214 = vmatpush1.msra.mxu0 0.0
    %215 = vmatprep.subr.mxu0 0.0
    %216 = vmatpush1.msra.mxu0 0.0
    %217 = vmatprep.subr.mxu0 0.0
    %218 = vmatpush1.msra.mxu0 0.0
    %219 = vmatprep.subr.mxu0 0.0
    %220 = vmatpush1.msra.mxu0 0.0
    %221 = vmatprep.subr.mxu0 0.0
    %222 = vmatpush1.msra.mxu0 0.0
    %223 = vmatprep.subr.mxu0 0.0
    %224 = vmatpush1.msra.mxu0 0.0
    %225 = vmatprep.subr.mxu0 0.0
    %226 = vmatpush1.msra.mxu0 0.0
    %227 = vmatprep.subr.mxu0 0.0
    %228 = vmatpush1.msra.mxu0 0.0
    %229 = vmatprep.subr.mxu0 0.0
    %230 = vmatpush1.msra.mxu0 0.0
    %231 = vmatprep.subr.mxu0 0.0
    %232 = vmatpush1.msra.mxu0 0.0
    %233 = vmatprep.subr.mxu0 0.0
    %234 = vmatpush1.msra.mxu0 0.0
    %235 = vmatprep.subr.mxu0 0.0
    %236 = vmatpush1.msra.mxu0 0.0
    %237 = vmatprep.subr.mxu0 0.0
    %238 = vmatpush1.msra.mxu0 0.0
    %239 = vmatprep.mubr.f32.mxu0 0.0
    %v240 = vand.u32 %v86, 4294901760
    %241 = vmatmul.mubr.f32.gmra.mrb[0].mxu0 %v240
    %v242 = vpop.f32.mrb[0].mxu0
    %v243 = vadd.f32 %v162, %v242
    %v244 = vpop.f32.mrb[0].mxu0
    %245 = vdwg.mxu0
    %246 = vmatprep.subr.mxu0 0.0
    %v247 = vand.u32 %v75, 4294901760
    %v248 = vsub.f32 %v75, %v247
    %249 = vmatpush1.msra.mxu0 %v248
    %250 = vmatprep.subr.mxu0 0.0
    %v251 = vand.u32 %v76, 4294901760
    %v252 = vsub.f32 %v76, %v251
    %253 = vmatpush1.msra.mxu0 %v252
    %254 = vmatprep.subr.mxu0 0.0
    %255 = vmatpush1.msra.mxu0 0.0
    %256 = vmatprep.subr.mxu0 0.0
    %257 = vmatpush1.msra.mxu0 0.0
    %258 = vmatprep.subr.mxu0 0.0
    %259 = vmatpush1.msra.mxu0 0.0
    %260 = vmatprep.subr.mxu0 0.0
    %261 = vmatpush1.msra.mxu0 0.0
    %262 = vmatprep.subr.mxu0 0.0
    %263 = vmatpush1.msra.mxu0 0.0
    %264 = vmatprep.subr.mxu0 0.0
    %265 = vmatpush1.msra.mxu0 0.0
    %266 = vmatprep.subr.mxu0 0.0
    %267 = vmatpush1.msra.mxu0 0.0
    %268 = vmatprep.subr.mxu0 0.0
    %269 = vmatpush1.msra.mxu0 0.0
    %270 = vmatprep.subr.mxu0 0.0
    %271 = vmatpush1.msra.mxu0 0.0
    %272 = vmatprep.subr.mxu0 0.0
    %273 = vmatpush1.msra.mxu0 0.0
    %274 = vmatprep.subr.mxu0 0.0
    %275 = vmatpush1.msra.mxu0 0.0
    %276 = vmatprep.subr.mxu0 0.0
    %277 = vmatpush1.msra.mxu0 0.0
    %278 = vmatprep.subr.mxu0 0.0
    %279 = vmatpush1.msra.mxu0 0.0
    %280 = vmatprep.subr.mxu0 0.0
    %281 = vmatpush1.msra.mxu0 0.0
    %282 = vmatprep.subr.mxu0 0.0
    %283 = vmatpush1.msra.mxu0 0.0
    %284 = vmatprep.subr.mxu0 0.0
    %285 = vmatpush1.msra.mxu0 0.0
    %286 = vmatprep.subr.mxu0 0.0
    %287 = vmatpush1.msra.mxu0 0.0
    %288 = vmatprep.subr.mxu0 0.0
    %289 = vmatpush1.msra.mxu0 0.0
    %290 = vmatprep.subr.mxu0 0.0
    %291 = vmatpush1.msra.mxu0 0.0
    %292 = vmatprep.subr.mxu0 0.0
    %293 = vmatpush1.msra.mxu0 0.0
    %294 = vmatprep.subr.mxu0 0.0
    %295 = vmatpush1.msra.mxu0 0.0
    %296 = vmatprep.subr.mxu0 0.0
    %297 = vmatpush1.msra.mxu0 0.0
    %298 = vmatprep.subr.mxu0 0.0
    %299 = vmatpush1.msra.mxu0 0.0
    %300 = vmatprep.subr.mxu0 0.0
    %301 = vmatpush1.msra.mxu0 0.0
    %302 = vmatprep.subr.mxu0 0.0
    %303 = vmatpush1.msra.mxu0 0.0
    %304 = vmatprep.subr.mxu0 0.0
    %305 = vmatpush1.msra.mxu0 0.0
    %306 = vmatprep.subr.mxu0 0.0
    %307 = vmatpush1.msra.mxu0 0.0
    %308 = vmatprep.subr.mxu0 0.0
    %309 = vmatpush1.msra.mxu0 0.0
    %310 = vmatprep.subr.mxu0 0.0
    %311 = vmatpush1.msra.mxu0 0.0
    %312 = vmatprep.subr.mxu0 0.0
    %313 = vmatpush1.msra.mxu0 0.0
    %314 = vmatprep.mubr.f32.mxu0 0.0
    %v315 = vand.u32 %v86, 4294901760
    %v316 = vsub.f32 %v86, %v315
    %317 = vmatmul.mubr.f32.gmra.mrb[0].mxu0 %v316
    %v318 = vpop.f32.mrb[0].mxu0
    %v319 = vadd.f32 %v243, %v318
    %v320 = vpop.f32.mrb[0].mxu0
    %321 = vdwg.mxu0
    %322 = vmatprep.subr.mxu0 0.0
    %v323 = vand.u32 %v75, 4294901760
    %324 = vmatpush1.msra.mxu0 %v323
    %325 = vmatprep.subr.mxu0 0.0
    %v326 = vand.u32 %v76, 4294901760
    %327 = vmatpush1.msra.mxu0 %v326
    %328 = vmatprep.subr.mxu0 0.0
    %329 = vmatpush1.msra.mxu0 0.0
    %330 = vmatprep.subr.mxu0 0.0
    %331 = vmatpush1.msra.mxu0 0.0
    %332 = vmatprep.subr.mxu0 0.0
    %333 = vmatpush1.msra.mxu0 0.0
    %334 = vmatprep.subr.mxu0 0.0
    %335 = vmatpush1.msra.mxu0 0.0
    %336 = vmatprep.subr.mxu0 0.0
    %337 = vmatpush1.msra.mxu0 0.0
    %338 = vmatprep.subr.mxu0 0.0
    %339 = vmatpush1.msra.mxu0 0.0
    %340 = vmatprep.subr.mxu0 0.0
    %341 = vmatpush1.msra.mxu0 0.0
    %342 = vmatprep.subr.mxu0 0.0
    %343 = vmatpush1.msra.mxu0 0.0
    %344 = vmatprep.subr.mxu0 0.0
    %345 = vmatpush1.msra.mxu0 0.0
    %346 = vmatprep.subr.mxu0 0.0
    %347 = vmatpush1.msra.mxu0 0.0
    %348 = vmatprep.subr.mxu0 0.0
    %349 = vmatpush1.msra.mxu0 0.0
    %350 = vmatprep.subr.mxu0 0.0
    %351 = vmatpush1.msra.mxu0 0.0
    %352 = vmatprep.subr.mxu0 0.0
    %353 = vmatpush1.msra.mxu0 0.0
    %354 = vmatprep.subr.mxu0 0.0
    %355 = vmatpush1.msra.mxu0 0.0
    %356 = vmatprep.subr.mxu0 0.0
    %357 = vmatpush1.msra.mxu0 0.0
    %358 = vmatprep.subr.mxu0 0.0
    %359 = vmatpush1.msra.mxu0 0.0
    %360 = vmatprep.subr.mxu0 0.0
    %361 = vmatpush1.msra.mxu0 0.0
    %362 = vmatprep.subr.mxu0 0.0
    %363 = vmatpush1.msra.mxu0 0.0
    %364 = vmatprep.subr.mxu0 0.0
    %365 = vmatpush1.msra.mxu0 0.0
    %366 = vmatprep.subr.mxu0 0.0
    %367 = vmatpush1.msra.mxu0 0.0
    %368 = vmatprep.subr.mxu0 0.0
    %369 = vmatpush1.msra.mxu0 0.0
    %370 = vmatprep.subr.mxu0 0.0
    %371 = vmatpush1.msra.mxu0 0.0
    %372 = vmatprep.subr.mxu0 0.0
    %373 = vmatpush1.msra.mxu0 0.0
    %374 = vmatprep.subr.mxu0 0.0
    %375 = vmatpush1.msra.mxu0 0.0
    %376 = vmatprep.subr.mxu0 0.0
    %377 = vmatpush1.msra.mxu0 0.0
    %378 = vmatprep.subr.mxu0 0.0
    %379 = vmatpush1.msra.mxu0 0.0
    %380 = vmatprep.subr.mxu0 0.0
    %381 = vmatpush1.msra.mxu0 0.0
    %382 = vmatprep.subr.mxu0 0.0
    %383 = vmatpush1.msra.mxu0 0.0
    %384 = vmatprep.subr.mxu0 0.0
    %385 = vmatpush1.msra.mxu0 0.0
    %386 = vmatprep.subr.mxu0 0.0
    %387 = vmatpush1.msra.mxu0 0.0
    %388 = vmatprep.mubr.f32.mxu0 0.0
    %v389 = vand.u32 %v86, 4294901760
    %v390 = vsub.f32 %v86, %v389
    %v391 = vand.u32 %v390, 4294901760
    %392 = vmatmul.mubr.f32.gmra.mrb[0].mxu0 %v391
    %v393 = vpop.f32.mrb[0].mxu0
    %v394 = vadd.f32 %v319, %v393
    %v395 = vpop.f32.mrb[0].mxu0
    %396 = vdwg.mxu0
    %397 = vmatprep.subr.mxu0 0.0
    %v398 = vand.u32 %v75, 4294901760
    %v399 = vsub.f32 %v75, %v398
    %v400 = vand.u32 %v399, 4294901760
    %401 = vmatpush1.msra.mxu0 %v400
    %402 = vmatprep.subr.mxu0 0.0
    %v403 = vand.u32 %v76, 4294901760
    %v404 = vsub.f32 %v76, %v403
    %v405 = vand.u32 %v404, 4294901760
    %406 = vmatpush1.msra.mxu0 %v405
    %407 = vmatprep.subr.mxu0 0.0
    %408 = vmatpush1.msra.mxu0 0.0
    %409 = vmatprep.subr.mxu0 0.0
    %410 = vmatpush1.msra.mxu0 0.0
    %411 = vmatprep.subr.mxu0 0.0
    %412 = vmatpush1.msra.mxu0 0.0
    %413 = vmatprep.subr.mxu0 0.0
    %414 = vmatpush1.msra.mxu0 0.0
    %415 = vmatprep.subr.mxu0 0.0
    %416 = vmatpush1.msra.mxu0 0.0
    %417 = vmatprep.subr.mxu0 0.0
    %418 = vmatpush1.msra.mxu0 0.0
    %419 = vmatprep.subr.mxu0 0.0
    %420 = vmatpush1.msra.mxu0 0.0
    %421 = vmatprep.subr.mxu0 0.0
    %422 = vmatpush1.msra.mxu0 0.0
    %423 = vmatprep.subr.mxu0 0.0
    %424 = vmatpush1.msra.mxu0 0.0
    %425 = vmatprep.subr.mxu0 0.0
    %426 = vmatpush1.msra.mxu0 0.0
    %427 = vmatprep.subr.mxu0 0.0
    %428 = vmatpush1.msra.mxu0 0.0
    %429 = vmatprep.subr.mxu0 0.0
    %430 = vmatpush1.msra.mxu0 0.0
    %431 = vmatprep.subr.mxu0 0.0
    %432 = vmatpush1.msra.mxu0 0.0
    %433 = vmatprep.subr.mxu0 0.0
    %434 = vmatpush1.msra.mxu0 0.0
    %435 = vmatprep.subr.mxu0 0.0
    %436 = vmatpush1.msra.mxu0 0.0
    %437 = vmatprep.subr.mxu0 0.0
    %438 = vmatpush1.msra.mxu0 0.0
    %439 = vmatprep.subr.mxu0 0.0
    %440 = vmatpush1.msra.mxu0 0.0
    %441 = vmatprep.subr.mxu0 0.0
    %442 = vmatpush1.msra.mxu0 0.0
    %443 = vmatprep.subr.mxu0 0.0
    %444 = vmatpush1.msra.mxu0 0.0
    %445 = vmatprep.subr.mxu0 0.0
    %446 = vmatpush1.msra.mxu0 0.0
    %447 = vmatprep.subr.mxu0 0.0
    %448 = vmatpush1.msra.mxu0 0.0
    %449 = vmatprep.subr.mxu0 0.0
    %450 = vmatpush1.msra.mxu0 0.0
    %451 = vmatprep.subr.mxu0 0.0
    %452 = vmatpush1.msra.mxu0 0.0
    %453 = vmatprep.subr.mxu0 0.0
    %454 = vmatpush1.msra.mxu0 0.0
    %455 = vmatprep.subr.mxu0 0.0
    %456 = vmatpush1.msra.mxu0 0.0
    %457 = vmatprep.subr.mxu0 0.0
    %458 = vmatpush1.msra.mxu0 0.0
    %459 = vmatprep.subr.mxu0 0.0
    %460 = vmatpush1.msra.mxu0 0.0
    %461 = vmatprep.subr.mxu0 0.0
    %462 = vmatpush1.msra.mxu0 0.0
    %463 = vmatprep.subr.mxu0 0.0
    %464 = vmatpush1.msra.mxu0 0.0
    %465 = vmatprep.subr.mxu0 0.0
    %466 = vmatpush1.msra.mxu0 0.0
    %467 = vmatprep.mubr.f32.mxu0 0.0
    %v468 = vand.u32 %v86, 4294901760
    %469 = vmatmul.mubr.f32.gmra.mrb[0].mxu0 %v468
    %v470 = vpop.f32.mrb[0].mxu0
    %v471 = vadd.f32 %v394, %v470
    %v472 = vpop.f32.mrb[0].mxu0
    %473 = vdwg.mxu0
    %474 = vmatprep.subr.mxu0 0.0
    %v475 = vand.u32 %v75, 4294901760
    %476 = vmatpush1.msra.mxu0 %v475
    %477 = vmatprep.subr.mxu0 0.0
    %v478 = vand.u32 %v76, 4294901760
    %479 = vmatpush1.msra.mxu0 %v478
    %480 = vmatprep.subr.mxu0 0.0
    %481 = vmatpush1.msra.mxu0 0.0
    %482 = vmatprep.subr.mxu0 0.0
    %483 = vmatpush1.msra.mxu0 0.0
    %484 = vmatprep.subr.mxu0 0.0
    %485 = vmatpush1.msra.mxu0 0.0
    %486 = vmatprep.subr.mxu0 0.0
    %487 = vmatpush1.msra.mxu0 0.0
    %488 = vmatprep.subr.mxu0 0.0
    %489 = vmatpush1.msra.mxu0 0.0
    %490 = vmatprep.subr.mxu0 0.0
    %491 = vmatpush1.msra.mxu0 0.0
    %492 = vmatprep.subr.mxu0 0.0
    %493 = vmatpush1.msra.mxu0 0.0
    %494 = vmatprep.subr.mxu0 0.0
    %495 = vmatpush1.msra.mxu0 0.0
    %496 = vmatprep.subr.mxu0 0.0
    %497 = vmatpush1.msra.mxu0 0.0
    %498 = vmatprep.subr.mxu0 0.0
    %499 = vmatpush1.msra.mxu0 0.0
    %500 = vmatprep.subr.mxu0 0.0
    %501 = vmatpush1.msra.mxu0 0.0
    %502 = vmatprep.subr.mxu0 0.0
    %503 = vmatpush1.msra.mxu0 0.0
    %504 = vmatprep.subr.mxu0 0.0
    %505 = vmatpush1.msra.mxu0 0.0
    %506 = vmatprep.subr.mxu0 0.0
    %507 = vmatpush1.msra.mxu0 0.0
    %508 = vmatprep.subr.mxu0 0.0
    %509 = vmatpush1.msra.mxu0 0.0
    %510 = vmatprep.subr.mxu0 0.0
    %511 = vmatpush1.msra.mxu0 0.0
    %512 = vmatprep.subr.mxu0 0.0
    %513 = vmatpush1.msra.mxu0 0.0
    %514 = vmatprep.subr.mxu0 0.0
    %515 = vmatpush1.msra.mxu0 0.0
    %516 = vmatprep.subr.mxu0 0.0
    %517 = vmatpush1.msra.mxu0 0.0
    %518 = vmatprep.subr.mxu0 0.0
    %519 = vmatpush1.msra.mxu0 0.0
    %520 = vmatprep.subr.mxu0 0.0
    %521 = vmatpush1.msra.mxu0 0.0
    %522 = vmatprep.subr.mxu0 0.0
    %523 = vmatpush1.msra.mxu0 0.0
    %524 = vmatprep.subr.mxu0 0.0
    %525 = vmatpush1.msra.mxu0 0.0
    %526 = vmatprep.subr.mxu0 0.0
    %527 = vmatpush1.msra.mxu0 0.0
    %528 = vmatprep.subr.mxu0 0.0
    %529 = vmatpush1.msra.mxu0 0.0
    %530 = vmatprep.subr.mxu0 0.0
    %531 = vmatpush1.msra.mxu0 0.0
    %532 = vmatprep.subr.mxu0 0.0
    %533 = vmatpush1.msra.mxu0 0.0
    %534 = vmatprep.subr.mxu0 0.0
    %535 = vmatpush1.msra.mxu0 0.0
    %536 = vmatprep.subr.mxu0 0.0
    %537 = vmatpush1.msra.mxu0 0.0
    %538 = vmatprep.subr.mxu0 0.0
    %539 = vmatpush1.msra.mxu0 0.0
    %540 = vmatprep.mubr.f32.mxu0 0.0
    %v541 = vand.u32 %v86, 4294901760
    %542 = vmatmul.mubr.f32.gmra.mrb[0].mxu0 %v541
    %v543 = vpop.f32.mrb[0].mxu0
    %v544 = vadd.f32 %v471, %v543
    %v545 = vpop.f32.mrb[0].mxu0
    %546 = vdwg.mxu0
    %v547 = vmax.f32 %v544, 0.0
    %v548 = vld [vmem:[#allocation7] sm:$0xff]
    %v549 = vld [vmem:[#allocation7 + $0x8] sm:$0xff]
    %v550 = vld [vmem:[#allocation7 + $0x10] sm:$0xff]
    %v551 = vld [vmem:[#allocation7 + $0x18] sm:$0xff]
    %v552 = vld [vmem:[#allocation7 + $0x20] sm:$0xff]
    %v553 = vld [vmem:[#allocation7 + $0x28] sm:$0xff]
    %v554 = vld [vmem:[#allocation7 + $0x30] sm:$0xff]
    %v555 = vld [vmem:[#allocation7 + $0x38] sm:$0xff]
    %v556 = vld [vmem:[#allocation7 + $0x40] sm:$0xff]
    %v557 = vld [vmem:[#allocation7 + $0x48] sm:$0xff]
    %v558 = vld [vmem:[#allocation7 + $0x50] sm:$0xff]
    %v559 = vld [vmem:[#allocation7 + $0x58] sm:$0xff]
    %v560 = vld [vmem:[#allocation7 + $0x60] sm:$0xff]
    %v561 = vld [vmem:[#allocation7 + $0x68] sm:$0xff]
    %v562 = vld [vmem:[#allocation7 + $0x70] sm:$0xff]
    %v563 = vld [vmem:[#allocation7 + $0x78] sm:$0xff]
    %564 = vmatprep.subr.mxu0 0.0
    %v565 = vand.u32 %v548, 4294901760
    %566 = vmatpush1.msra.mxu0 %v565
    %567 = vmatprep.subr.mxu0 0.0
    %v568 = vand.u32 %v549, 4294901760
    %569 = vmatpush1.msra.mxu0 %v568
    %570 = vmatprep.subr.mxu0 0.0
    %v571 = vand.u32 %v550, 4294901760
    %572 = vmatpush1.msra.mxu0 %v571
    %573 = vmatprep.subr.mxu0 0.0
    %v574 = vand.u32 %v551, 4294901760
    %575 = vmatpush1.msra.mxu0 %v574
    %576 = vmatprep.subr.mxu0 0.0
    %v577 = vand.u32 %v552, 4294901760
    %578 = vmatpush1.msra.mxu0 %v577
    %579 = vmatprep.subr.mxu0 0.0
    %v580 = vand.u32 %v553, 4294901760
    %581 = vmatpush1.msra.mxu0 %v580
    %582 = vmatprep.subr.mxu0 0.0
    %v583 = vand.u32 %v554, 4294901760
    %584 = vmatpush1.msra.mxu0 %v583
    %585 = vmatprep.subr.mxu0 0.0
    %v586 = vand.u32 %v555, 4294901760
    %587 = vmatpush1.msra.mxu0 %v586
    %588 = vmatprep.subr.mxu0 0.0
    %v589 = vand.u32 %v556, 4294901760
    %590 = vmatpush1.msra.mxu0 %v589
    %591 = vmatprep.subr.mxu0 0.0
    %v592 = vand.u32 %v557, 4294901760
    %593 = vmatpush1.msra.mxu0 %v592
    %594 = vmatprep.subr.mxu0 0.0
    %v595 = vand.u32 %v558, 4294901760
    %596 = vmatpush1.msra.mxu0 %v595
    %597 = vmatprep.subr.mxu0 0.0
    %v598 = vand.u32 %v559, 4294901760
    %599 = vmatpush1.msra.mxu0 %v598
    %600 = vmatprep.subr.mxu0 0.0
    %v601 = vand.u32 %v560, 4294901760
    %602 = vmatpush1.msra.mxu0 %v601
    %603 = vmatprep.subr.mxu0 0.0
    %v604 = vand.u32 %v561, 4294901760
    %605 = vmatpush1.msra.mxu0 %v604
    %606 = vmatprep.subr.mxu0 0.0
    %v607 = vand.u32 %v562, 4294901760
    %608 = vmatpush1.msra.mxu0 %v607
    %609 = vmatprep.subr.mxu0 0.0
    %v610 = vand.u32 %v563, 4294901760
    %611 = vmatpush1.msra.mxu0 %v610
    %612 = vmatprep.subr.mxu0 0.0
    %613 = vmatpush1.msra.mxu0 0.0
    %614 = vmatprep.subr.mxu0 0.0
    %615 = vmatpush1.msra.mxu0 0.0
    %616 = vmatprep.subr.mxu0 0.0
    %617 = vmatpush1.msra.mxu0 0.0
    %618 = vmatprep.subr.mxu0 0.0
    %619 = vmatpush1.msra.mxu0 0.0
    %620 = vmatprep.subr.mxu0 0.0
    %621 = vmatpush1.msra.mxu0 0.0
    %622 = vmatprep.subr.mxu0 0.0
    %623 = vmatpush1.msra.mxu0 0.0
    %624 = vmatprep.subr.mxu0 0.0
    %625 = vmatpush1.msra.mxu0 0.0
    %626 = vmatprep.subr.mxu0 0.0
    %627 = vmatpush1.msra.mxu0 0.0
    %628 = vmatprep.subr.mxu0 0.0
    %629 = vmatpush1.msra.mxu0 0.0
    %630 = vmatprep.subr.mxu0 0.0
    %631 = vmatpush1.msra.mxu0 0.0
    %632 = vmatprep.subr.mxu0 0.0
    %633 = vmatpush1.msra.mxu0 0.0
    %634 = vmatprep.subr.mxu0 0.0
    %635 = vmatpush1.msra.mxu0 0.0
    %636 = vmatprep.subr.mxu0 0.0
    %637 = vmatpush1.msra.mxu0 0.0
    %638 = vmatprep.subr.mxu0 0.0
    %639 = vmatpush1.msra.mxu0 0.0
    %640 = vmatprep.subr.mxu0 0.0
    %641 = vmatpush1.msra.mxu0 0.0
    %642 = vmatprep.subr.mxu0 0.0
    %643 = vmatpush1.msra.mxu0 0.0
    %644 = vmatprep.mubr.f32.mxu0 0.0
    %v645 = vand.u32 %v547, 4294901760
    %v646 = vsub.f32 %v547, %v645
    %v647 = vand.u32 %v646, 4294901760
    %v648 = vsub.f32 %v646, %v647
    %v649 = vand.u32 %v648, 4294901760
    %650 = vmatmul.mubr.f32.gmra.mrb[0].mxu0 %v649
    %v651 = vpop.f32.mrb[0].mxu0
    %v652 = vadd.f32 0.0, %v651
    %v653 = vpop.f32.mrb[0].mxu0
    %654 = vdwg.mxu0
    %655 = vmatprep.subr.mxu0 0.0
    %v656 = vand.u32 %v548, 4294901760
    %v657 = vsub.f32 %v548, %v656
    %v658 = vand.u32 %v657, 4294901760
    %v659 = vsub.f32 %v657, %v658
    %v660 = vand.u32 %v659, 4294901760
    %661 = vmatpush1.msra.mxu0 %v660
    %662 = vmatprep.subr.mxu0 0.0
    %v663 = vand.u32 %v549, 4294901760
    %v664 = vsub.f32 %v549, %v663
    %v665 = vand.u32 %v664, 4294901760
    %v666 = vsub.f32 %v664, %v665
    %v667 = vand.u32 %v666, 4294901760
    %668 = vmatpush1.msra.mxu0 %v667
    %669 = vmatprep.subr.mxu0 0.0
    %v670 = vand.u32 %v550, 4294901760
    %v671 = vsub.f32 %v550, %v670
    %v672 = vand.u32 %v671, 4294901760
    %v673 = vsub.f32 %v671, %v672
    %v674 = vand.u32 %v673, 4294901760
    %675 = vmatpush1.msra.mxu0 %v674
    %676 = vmatprep.subr.mxu0 0.0
    %v677 = vand.u32 %v551, 4294901760
    %v678 = vsub.f32 %v551, %v677
    %v679 = vand.u32 %v678, 4294901760
    %v680 = vsub.f32 %v678, %v679
    %v681 = vand.u32 %v680, 4294901760
    %682 = vmatpush1.msra.mxu0 %v681
    %683 = vmatprep.subr.mxu0 0.0
    %v684 = vand.u32 %v552, 4294901760
    %v685 = vsub.f32 %v552, %v684
    %v686 = vand.u32 %v685, 4294901760
    %v687 = vsub.f32 %v685, %v686
    %v688 = vand.u32 %v687, 4294901760
    %689 = vmatpush1.msra.mxu0 %v688
    %690 = vmatprep.subr.mxu0 0.0
    %v691 = vand.u32 %v553, 4294901760
    %v692 = vsub.f32 %v553, %v691
    %v693 = vand.u32 %v692, 4294901760
    %v694 = vsub.f32 %v692, %v693
    %v695 = vand.u32 %v694, 4294901760
    %696 = vmatpush1.msra.mxu0 %v695
    %697 = vmatprep.subr.mxu0 0.0
    %v698 = vand.u32 %v554, 4294901760
    %v699 = vsub.f32 %v554, %v698
    %v700 = vand.u32 %v699, 4294901760
    %v701 = vsub.f32 %v699, %v700
    %v702 = vand.u32 %v701, 4294901760
    %703 = vmatpush1.msra.mxu0 %v702
    %704 = vmatprep.subr.mxu0 0.0
    %v705 = vand.u32 %v555, 4294901760
    %v706 = vsub.f32 %v555, %v705
    %v707 = vand.u32 %v706, 4294901760
    %v708 = vsub.f32 %v706, %v707
    %v709 = vand.u32 %v708, 4294901760
    %710 = vmatpush1.msra.mxu0 %v709
    %711 = vmatprep.subr.mxu0 0.0
    %v712 = vand.u32 %v556, 4294901760
    %v713 = vsub.f32 %v556, %v712
    %v714 = vand.u32 %v713, 4294901760
    %v715 = vsub.f32 %v713, %v714
    %v716 = vand.u32 %v715, 4294901760
    %717 = vmatpush1.msra.mxu0 %v716
    %718 = vmatprep.subr.mxu0 0.0
    %v719 = vand.u32 %v557, 4294901760
    %v720 = vsub.f32 %v557, %v719
    %v721 = vand.u32 %v720, 4294901760
    %v722 = vsub.f32 %v720, %v721
    %v723 = vand.u32 %v722, 4294901760
    %724 = vmatpush1.msra.mxu0 %v723
    %725 = vmatprep.subr.mxu0 0.0
    %v726 = vand.u32 %v558, 4294901760
    %v727 = vsub.f32 %v558, %v726
    %v728 = vand.u32 %v727, 4294901760
    %v729 = vsub.f32 %v727, %v728
    %v730 = vand.u32 %v729, 4294901760
    %731 = vmatpush1.msra.mxu0 %v730
    %732 = vmatprep.subr.mxu0 0.0
    %v733 = vand.u32 %v559, 4294901760
    %v734 = vsub.f32 %v559, %v733
    %v735 = vand.u32 %v734, 4294901760
    %v736 = vsub.f32 %v734, %v735
    %v737 = vand.u32 %v736, 4294901760
    %738 = vmatpush1.msra.mxu0 %v737
    %739 = vmatprep.subr.mxu0 0.0
    %v740 = vand.u32 %v560, 4294901760
    %v741 = vsub.f32 %v560, %v740
    %v742 = vand.u32 %v741, 4294901760
    %v743 = vsub.f32 %v741, %v742
    %v744 = vand.u32 %v743, 4294901760
    %745 = vmatpush1.msra.mxu0 %v744
    %746 = vmatprep.subr.mxu0 0.0
    %v747 = vand.u32 %v561, 4294901760
    %v748 = vsub.f32 %v561, %v747
    %v749 = vand.u32 %v748, 4294901760
    %v750 = vsub.f32 %v748, %v749
    %v751 = vand.u32 %v750, 4294901760
    %752 = vmatpush1.msra.mxu0 %v751
    %753 = vmatprep.subr.mxu0 0.0
    %v754 = vand.u32 %v562, 4294901760
    %v755 = vsub.f32 %v562, %v754
    %v756 = vand.u32 %v755, 4294901760
    %v757 = vsub.f32 %v755, %v756
    %v758 = vand.u32 %v757, 4294901760
    %759 = vmatpush1.msra.mxu0 %v758
    %760 = vmatprep.subr.mxu0 0.0
    %v761 = vand.u32 %v563, 4294901760
    %v762 = vsub.f32 %v563, %v761
    %v763 = vand.u32 %v762, 4294901760
    %v764 = vsub.f32 %v762, %v763
    %v765 = vand.u32 %v764, 4294901760
    %766 = vmatpush1.msra.mxu0 %v765
    %767 = vmatprep.subr.mxu0 0.0
    %768 = vmatpush1.msra.mxu0 0.0
    %769 = vmatprep.subr.mxu0 0.0
    %770 = vmatpush1.msra.mxu0 0.0
    %771 = vmatprep.subr.mxu0 0.0
    %772 = vmatpush1.msra.mxu0 0.0
    %773 = vmatprep.subr.mxu0 0.0
    %774 = vmatpush1.msra.mxu0 0.0
    %775 = vmatprep.subr.mxu0 0.0
    %776 = vmatpush1.msra.mxu0 0.0
    %777 = vmatprep.subr.mxu0 0.0
    %778 = vmatpush1.msra.mxu0 0.0
    %779 = vmatprep.subr.mxu0 0.0
    %780 = vmatpush1.msra.mxu0 0.0
    %781 = vmatprep.subr.mxu0 0.0
    %782 = vmatpush1.msra.mxu0 0.0
    %783 = vmatprep.subr.mxu0 0.0
    %784 = vmatpush1.msra.mxu0 0.0
    %785 = vmatprep.subr.mxu0 0.0
    %786 = vmatpush1.msra.mxu0 0.0
    %787 = vmatprep.subr.mxu0 0.0
    %788 = vmatpush1.msra.mxu0 0.0
    %789 = vmatprep.subr.mxu0 0.0
    %790 = vmatpush1.msra.mxu0 0.0
    %791 = vmatprep.subr.mxu0 0.0
    %792 = vmatpush1.msra.mxu0 0.0
    %793 = vmatprep.subr.mxu0 0.0
    %794 = vmatpush1.msra.mxu0 0.0
    %795 = vmatprep.subr.mxu0 0.0
    %796 = vmatpush1.msra.mxu0 0.0
    %797 = vmatprep.subr.mxu0 0.0
    %798 = vmatpush1.msra.mxu0 0.0
    %799 = vmatprep.mubr.f32.mxu0 0.0
    %v800 = vand.u32 %v547, 4294901760
    %801 = vmatmul.mubr.f32.gmra.mrb[0].mxu0 %v800
    %v802 = vpop.f32.mrb[0].mxu0
    %v803 = vadd.f32 %v652, %v802
    %v804 = vpop.f32.mrb[0].mxu0
    %805 = vdwg.mxu0
    %806 = vmatprep.subr.mxu0 0.0
    %v807 = vand.u32 %v548, 4294901760
    %v808 = vsub.f32 %v548, %v807
    %809 = vmatpush1.msra.mxu0 %v808
    %810 = vmatprep.subr.mxu0 0.0
    %v811 = vand.u32 %v549, 4294901760
    %v812 = vsub.f32 %v549, %v811
    %813 = vmatpush1.msra.mxu0 %v812
    %814 = vmatprep.subr.mxu0 0.0
    %v815 = vand.u32 %v550, 4294901760
    %v816 = vsub.f32 %v550, %v815
    %817 = vmatpush1.msra.mxu0 %v816
    %818 = vmatprep.subr.mxu0 0.0
    %v819 = vand.u32 %v551, 4294901760
    %v820 = vsub.f32 %v551, %v819
    %821 = vmatpush1.msra.mxu0 %v820
    %822 = vmatprep.subr.mxu0 0.0
    %v823 = vand.u32 %v552, 4294901760
    %v824 = vsub.f32 %v552, %v823
    %825 = vmatpush1.msra.mxu0 %v824
    %826 = vmatprep.subr.mxu0 0.0
    %v827 = vand.u32 %v553, 4294901760
    %v828 = vsub.f32 %v553, %v827
    %829 = vmatpush1.msra.mxu0 %v828
    %830 = vmatprep.subr.mxu0 0.0
    %v831 = vand.u32 %v554, 4294901760
    %v832 = vsub.f32 %v554, %v831
    %833 = vmatpush1.msra.mxu0 %v832
    %834 = vmatprep.subr.mxu0 0.0
    %v835 = vand.u32 %v555, 4294901760
    %v836 = vsub.f32 %v555, %v835
    %837 = vmatpush1.msra.mxu0 %v836
    %838 = vmatprep.subr.mxu0 0.0
    %v839 = vand.u32 %v556, 4294901760
    %v840 = vsub.f32 %v556, %v839
    %841 = vmatpush1.msra.mxu0 %v840
    %842 = vmatprep.subr.mxu0 0.0
    %v843 = vand.u32 %v557, 4294901760
    %v844 = vsub.f32 %v557, %v843
    %845 = vmatpush1.msra.mxu0 %v844
    %846 = vmatprep.subr.mxu0 0.0
    %v847 = vand.u32 %v558, 4294901760
    %v848 = vsub.f32 %v558, %v847
    %849 = vmatpush1.msra.mxu0 %v848
    %850 = vmatprep.subr.mxu0 0.0
    %v851 = vand.u32 %v559, 4294901760
    %v852 = vsub.f32 %v559, %v851
    %853 = vmatpush1.msra.mxu0 %v852
    %854 = vmatprep.subr.mxu0 0.0
    %v855 = vand.u32 %v560, 4294901760
    %v856 = vsub.f32 %v560, %v855
    %857 = vmatpush1.msra.mxu0 %v856
    %858 = vmatprep.subr.mxu0 0.0
    %v859 = vand.u32 %v561, 4294901760
    %v860 = vsub.f32 %v561, %v859
    %861 = vmatpush1.msra.mxu0 %v860
    %862 = vmatprep.subr.mxu0 0.0
    %v863 = vand.u32 %v562, 4294901760
    %v864 = vsub.f32 %v562, %v863
    %865 = vmatpush1.msra.mxu0 %v864
    %866 = vmatprep.subr.mxu0 0.0
    %v867 = vand.u32 %v563, 4294901760
    %v868 = vsub.f32 %v563, %v867
    %869 = vmatpush1.msra.mxu0 %v868
    %870 = vmatprep.subr.mxu0 0.0
    %871 = vmatpush1.msra.mxu0 0.0
    %872 = vmatprep.subr.mxu0 0.0
    %873 = vmatpush1.msra.mxu0 0.0
    %874 = vmatprep.subr.mxu0 0.0
    %875 = vmatpush1.msra.mxu0 0.0
    %876 = vmatprep.subr.mxu0 0.0
    %877 = vmatpush1.msra.mxu0 0.0
    %878 = vmatprep.subr.mxu0 0.0
    %879 = vmatpush1.msra.mxu0 0.0
    %880 = vmatprep.subr.mxu0 0.0
    %881 = vmatpush1.msra.mxu0 0.0
    %882 = vmatprep.subr.mxu0 0.0
    %883 = vmatpush1.msra.mxu0 0.0
    %884 = vmatprep.subr.mxu0 0.0
    %885 = vmatpush1.msra.mxu0 0.0
    %886 = vmatprep.subr.mxu0 0.0
    %887 = vmatpush1.msra.mxu0 0.0
    %888 = vmatprep.subr.mxu0 0.0
    %889 = vmatpush1.msra.mxu0 0.0
    %890 = vmatprep.subr.mxu0 0.0
    %891 = vmatpush1.msra.mxu0 0.0
    %892 = vmatprep.subr.mxu0 0.0
    %893 = vmatpush1.msra.mxu0 0.0
    %894 = vmatprep.subr.mxu0 0.0
    %895 = vmatpush1.msra.mxu0 0.0
    %896 = vmatprep.subr.mxu0 0.0
    %897 = vmatpush1.msra.mxu0 0.0
    %898 = vmatprep.subr.mxu0 0.0
    %899 = vmatpush1.msra.mxu0 0.0
    %900 = vmatprep.subr.mxu0 0.0
    %901 = vmatpush1.msra.mxu0 0.0
    %902 = vmatprep.mubr.f32.mxu0 0.0
    %v903 = vand.u32 %v547, 4294901760
    %v904 = vsub.f32 %v547, %v903
    %905 = vmatmul.mubr.f32.gmra.mrb[0].mxu0 %v904
    %v906 = vpop.f32.mrb[0].mxu0
    %v907 = vadd.f32 %v803, %v906
    %v908 = vpop.f32.mrb[0].mxu0
    %909 = vdwg.mxu0
    %910 = vmatprep.subr.mxu0 0.0
    %v911 = vand.u32 %v548, 4294901760
    %912 = vmatpush1.msra.mxu0 %v911
    %913 = vmatprep.subr.mxu0 0.0
    %v914 = vand.u32 %v549, 4294901760
    %915 = vmatpush1.msra.mxu0 %v914
    %916 = vmatprep.subr.mxu0 0.0
    %v917 = vand.u32 %v550, 4294901760
    %918 = vmatpush1.msra.mxu0 %v917
    %919 = vmatprep.subr.mxu0 0.0
    %v920 = vand.u32 %v551, 4294901760
    %921 = vmatpush1.msra.mxu0 %v920
    %922 = vmatprep.subr.mxu0 0.0
    %v923 = vand.u32 %v552, 4294901760
    %924 = vmatpush1.msra.mxu0 %v923
    %925 = vmatprep.subr.mxu0 0.0
    %v926 = vand.u32 %v553, 4294901760
    %927 = vmatpush1.msra.mxu0 %v926
    %928 = vmatprep.subr.mxu0 0.0
    %v929 = vand.u32 %v554, 4294901760
    %930 = vmatpush1.msra.mxu0 %v929
    %931 = vmatprep.subr.mxu0 0.0
    %v932 = vand.u32 %v555, 4294901760
    %933 = vmatpush1.msra.mxu0 %v932
    %934 = vmatprep.subr.mxu0 0.0
    %v935 = vand.u32 %v556, 4294901760
    %936 = vmatpush1.msra.mxu0 %v935
    %937 = vmatprep.subr.mxu0 0.0
    %v938 = vand.u32 %v557, 4294901760
    %939 = vmatpush1.msra.mxu0 %v938
    %940 = vmatprep.subr.mxu0 0.0
    %v941 = vand.u32 %v558, 4294901760
    %942 = vmatpush1.msra.mxu0 %v941
    %943 = vmatprep.subr.mxu0 0.0
    %v944 = vand.u32 %v559, 4294901760
    %945 = vmatpush1.msra.mxu0 %v944
    %946 = vmatprep.subr.mxu0 0.0
    %v947 = vand.u32 %v560, 4294901760
    %948 = vmatpush1.msra.mxu0 %v947
    %949 = vmatprep.subr.mxu0 0.0
    %v950 = vand.u32 %v561, 4294901760
    %951 = vmatpush1.msra.mxu0 %v950
    %952 = vmatprep.subr.mxu0 0.0
    %v953 = vand.u32 %v562, 4294901760
    %954 = vmatpush1.msra.mxu0 %v953
    %955 = vmatprep.subr.mxu0 0.0
    %v956 = vand.u32 %v563, 4294901760
    %957 = vmatpush1.msra.mxu0 %v956
    %958 = vmatprep.subr.mxu0 0.0
    %959 = vmatpush1.msra.mxu0 0.0
    %960 = vmatprep.subr.mxu0 0.0
    %961 = vmatpush1.msra.mxu0 0.0
    %962 = vmatprep.subr.mxu0 0.0
    %963 = vmatpush1.msra.mxu0 0.0
    %964 = vmatprep.subr.mxu0 0.0
    %965 = vmatpush1.msra.mxu0 0.0
    %966 = vmatprep.subr.mxu0 0.0
    %967 = vmatpush1.msra.mxu0 0.0
    %968 = vmatprep.subr.mxu0 0.0
    %969 = vmatpush1.msra.mxu0 0.0
    %970 = vmatprep.subr.mxu0 0.0
    %971 = vmatpush1.msra.mxu0 0.0
    %972 = vmatprep.subr.mxu0 0.0
    %973 = vmatpush1.msra.mxu0 0.0
    %974 = vmatprep.subr.mxu0 0.0
    %975 = vmatpush1.msra.mxu0 0.0
    %976 = vmatprep.subr.mxu0 0.0
    %977 = vmatpush1.msra.mxu0 0.0
    %978 = vmatprep.subr.mxu0 0.0
    %979 = vmatpush1.msra.mxu0 0.0
    %980 = vmatprep.subr.mxu0 0.0
    %981 = vmatpush1.msra.mxu0 0.0
    %982 = vmatprep.subr.mxu0 0.0
    %983 = vmatpush1.msra.mxu0 0.0
    %984 = vmatprep.subr.mxu0 0.0
    %985 = vmatpush1.msra.mxu0 0.0
    %986 = vmatprep.subr.mxu0 0.0
    %987 = vmatpush1.msra.mxu0 0.0
    %988 = vmatprep.subr.mxu0 0.0
    %989 = vmatpush1.msra.mxu0 0.0
    %990 = vmatprep.mubr.f32.mxu0 0.0
    %v991 = vand.u32 %v547, 4294901760
    %v992 = vsub.f32 %v547, %v991
    %v993 = vand.u32 %v992, 4294901760
    %994 = vmatmul.mubr.f32.gmra.mrb[0].mxu0 %v993
    %v995 = vpop.f32.mrb[0].mxu0
    %v996 = vadd.f32 %v907, %v995
    %v997 = vpop.f32.mrb[0].mxu0
    %998 = vdwg.mxu0
    %999 = vmatprep.subr.mxu0 0.0
    %v1000 = vand.u32 %v548, 4294901760
    %v1001 = vsub.f32 %v548, %v1000
    %v1002 = vand.u32 %v1001, 4294901760
    %1003 = vmatpush1.msra.mxu0 %v1002
    %1004 = vmatprep.subr.mxu0 0.0
    %v1005 = vand.u32 %v549, 4294901760
    %v1006 = vsub.f32 %v549, %v1005
    %v1007 = vand.u32 %v1006, 4294901760
    %1008 = vmatpush1.msra.mxu0 %v1007
    %1009 = vmatprep.subr.mxu0 0.0
    %v1010 = vand.u32 %v550, 4294901760
    %v1011 = vsub.f32 %v550, %v1010
    %v1012 = vand.u32 %v1011, 4294901760
    %1013 = vmatpush1.msra.mxu0 %v1012
    %1014 = vmatprep.subr.mxu0 0.0
    %v1015 = vand.u32 %v551, 4294901760
    %v1016 = vsub.f32 %v551, %v1015
    %v1017 = vand.u32 %v1016, 4294901760
    %1018 = vmatpush1.msra.mxu0 %v1017
    %1019 = vmatprep.subr.mxu0 0.0
    %v1020 = vand.u32 %v552, 4294901760
    %v1021 = vsub.f32 %v552, %v1020
    %v1022 = vand.u32 %v1021, 4294901760
    %1023 = vmatpush1.msra.mxu0 %v1022
    %1024 = vmatprep.subr.mxu0 0.0
    %v1025 = vand.u32 %v553, 4294901760
    %v1026 = vsub.f32 %v553, %v1025
    %v1027 = vand.u32 %v1026, 4294901760
    %1028 = vmatpush1.msra.mxu0 %v1027
    %1029 = vmatprep.subr.mxu0 0.0
    %v1030 = vand.u32 %v554, 4294901760
    %v1031 = vsub.f32 %v554, %v1030
    %v1032 = vand.u32 %v1031, 4294901760
    %1033 = vmatpush1.msra.mxu0 %v1032
    %1034 = vmatprep.subr.mxu0 0.0
    %v1035 = vand.u32 %v555, 4294901760
    %v1036 = vsub.f32 %v555, %v1035
    %v1037 = vand.u32 %v1036, 4294901760
    %1038 = vmatpush1.msra.mxu0 %v1037
    %1039 = vmatprep.subr.mxu0 0.0
    %v1040 = vand.u32 %v556, 4294901760
    %v1041 = vsub.f32 %v556, %v1040
    %v1042 = vand.u32 %v1041, 4294901760
    %1043 = vmatpush1.msra.mxu0 %v1042
    %1044 = vmatprep.subr.mxu0 0.0
    %v1045 = vand.u32 %v557, 4294901760
    %v1046 = vsub.f32 %v557, %v1045
    %v1047 = vand.u32 %v1046, 4294901760
    %1048 = vmatpush1.msra.mxu0 %v1047
    %1049 = vmatprep.subr.mxu0 0.0
    %v1050 = vand.u32 %v558, 4294901760
    %v1051 = vsub.f32 %v558, %v1050
    %v1052 = vand.u32 %v1051, 4294901760
    %1053 = vmatpush1.msra.mxu0 %v1052
    %1054 = vmatprep.subr.mxu0 0.0
    %v1055 = vand.u32 %v559, 4294901760
    %v1056 = vsub.f32 %v559, %v1055
    %v1057 = vand.u32 %v1056, 4294901760
    %1058 = vmatpush1.msra.mxu0 %v1057
    %1059 = vmatprep.subr.mxu0 0.0
    %v1060 = vand.u32 %v560, 4294901760
    %v1061 = vsub.f32 %v560, %v1060
    %v1062 = vand.u32 %v1061, 4294901760
    %1063 = vmatpush1.msra.mxu0 %v1062
    %1064 = vmatprep.subr.mxu0 0.0
    %v1065 = vand.u32 %v561, 4294901760
    %v1066 = vsub.f32 %v561, %v1065
    %v1067 = vand.u32 %v1066, 4294901760
    %1068 = vmatpush1.msra.mxu0 %v1067
    %1069 = vmatprep.subr.mxu0 0.0
    %v1070 = vand.u32 %v562, 4294901760
    %v1071 = vsub.f32 %v562, %v1070
    %v1072 = vand.u32 %v1071, 4294901760
    %1073 = vmatpush1.msra.mxu0 %v1072
    %1074 = vmatprep.subr.mxu0 0.0
    %v1075 = vand.u32 %v563, 4294901760
    %v1076 = vsub.f32 %v563, %v1075
    %v1077 = vand.u32 %v1076, 4294901760
    %1078 = vmatpush1.msra.mxu0 %v1077
    %1079 = vmatprep.subr.mxu0 0.0
    %1080 = vmatpush1.msra.mxu0 0.0
    %1081 = vmatprep.subr.mxu0 0.0
    %1082 = vmatpush1.msra.mxu0 0.0
    %1083 = vmatprep.subr.mxu0 0.0
    %1084 = vmatpush1.msra.mxu0 0.0
    %1085 = vmatprep.subr.mxu0 0.0
    %1086 = vmatpush1.msra.mxu0 0.0
    %1087 = vmatprep.subr.mxu0 0.0
    %1088 = vmatpush1.msra.mxu0 0.0
    %1089 = vmatprep.subr.mxu0 0.0
    %1090 = vmatpush1.msra.mxu0 0.0
    %1091 = vmatprep.subr.mxu0 0.0
    %1092 = vmatpush1.msra.mxu0 0.0
    %1093 = vmatprep.subr.mxu0 0.0
    %1094 = vmatpush1.msra.mxu0 0.0
    %1095 = vmatprep.subr.mxu0 0.0
    %1096 = vmatpush1.msra.mxu0 0.0
    %1097 = vmatprep.subr.mxu0 0.0
    %1098 = vmatpush1.msra.mxu0 0.0
    %1099 = vmatprep.subr.mxu0 0.0
    %1100 = vmatpush1.msra.mxu0 0.0
    %1101 = vmatprep.subr.mxu0 0.0
    %1102 = vmatpush1.msra.mxu0 0.0
    %1103 = vmatprep.subr.mxu0 0.0
    %1104 = vmatpush1.msra.mxu0 0.0
    %1105 = vmatprep.subr.mxu0 0.0
    %1106 = vmatpush1.msra.mxu0 0.0
    %1107 = vmatprep.subr.mxu0 0.0
    %1108 = vmatpush1.msra.mxu0 0.0
    %1109 = vmatprep.subr.mxu0 0.0
    %1110 = vmatpush1.msra.mxu0 0.0
    %1111 = vmatprep.mubr.f32.mxu0 0.0
    %v1112 = vand.u32 %v547, 4294901760
    %1113 = vmatmul.mubr.f32.gmra.mrb[0].mxu0 %v1112
    %v1114 = vpop.f32.mrb[0].mxu0
    %v1115 = vadd.f32 %v996, %v1114
    %v1116 = vpop.f32.mrb[0].mxu0
    %1117 = vdwg.mxu0
    %1118 = vmatprep.subr.mxu0 0.0
    %v1119 = vand.u32 %v548, 4294901760
    %1120 = vmatpush1.msra.mxu0 %v1119
    %1121 = vmatprep.subr.mxu0 0.0
    %v1122 = vand.u32 %v549, 4294901760
    %1123 = vmatpush1.msra.mxu0 %v1122
    %1124 = vmatprep.subr.mxu0 0.0
    %v1125 = vand.u32 %v550, 4294901760
    %1126 = vmatpush1.msra.mxu0 %v1125
    %1127 = vmatprep.subr.mxu0 0.0
    %v1128 = vand.u32 %v551, 4294901760
    %1129 = vmatpush1.msra.mxu0 %v1128
    %1130 = vmatprep.subr.mxu0 0.0
    %v1131 = vand.u32 %v552, 4294901760
    %1132 = vmatpush1.msra.mxu0 %v1131
    %1133 = vmatprep.subr.mxu0 0.0
    %v1134 = vand.u32 %v553, 4294901760
    %1135 = vmatpush1.msra.mxu0 %v1134
    %1136 = vmatprep.subr.mxu0 0.0
    %v1137 = vand.u32 %v554, 4294901760
    %1138 = vmatpush1.msra.mxu0 %v1137
    %1139 = vmatprep.subr.mxu0 0.0
    %v1140 = vand.u32 %v555, 4294901760
    %1141 = vmatpush1.msra.mxu0 %v1140
    %1142 = vmatprep.subr.mxu0 0.0
    %v1143 = vand.u32 %v556, 4294901760
    %1144 = vmatpush1.msra.mxu0 %v1143
    %1145 = vmatprep.subr.mxu0 0.0
    %v1146 = vand.u32 %v557, 4294901760
    %1147 = vmatpush1.msra.mxu0 %v1146
    %1148 = vmatprep.subr.mxu0 0.0
    %v1149 = vand.u32 %v558, 4294901760
    %1150 = vmatpush1.msra.mxu0 %v1149
    %1151 = vmatprep.subr.mxu0 0.0
    %v1152 = vand.u32 %v559, 4294901760
    %1153 = vmatpush1.msra.mxu0 %v1152
    %1154 = vmatprep.subr.mxu0 0.0
    %v1155 = vand.u32 %v560, 4294901760
    %1156 = vmatpush1.msra.mxu0 %v1155
    %1157 = vmatprep.subr.mxu0 0.0
    %v1158 = vand.u32 %v561, 4294901760
    %1159 = vmatpush1.msra.mxu0 %v1158
    %1160 = vmatprep.subr.mxu0 0.0
    %v1161 = vand.u32 %v562, 4294901760
    %1162 = vmatpush1.msra.mxu0 %v1161
    %1163 = vmatprep.subr.mxu0 0.0
    %v1164 = vand.u32 %v563, 4294901760
    %1165 = vmatpush1.msra.mxu0 %v1164
    %1166 = vmatprep.subr.mxu0 0.0
    %1167 = vmatpush1.msra.mxu0 0.0
    %1168 = vmatprep.subr.mxu0 0.0
    %1169 = vmatpush1.msra.mxu0 0.0
    %1170 = vmatprep.subr.mxu0 0.0
    %1171 = vmatpush1.msra.mxu0 0.0
    %1172 = vmatprep.subr.mxu0 0.0
    %1173 = vmatpush1.msra.mxu0 0.0
    %1174 = vmatprep.subr.mxu0 0.0
    %1175 = vmatpush1.msra.mxu0 0.0
    %1176 = vmatprep.subr.mxu0 0.0
    %1177 = vmatpush1.msra.mxu0 0.0
    %1178 = vmatprep.subr.mxu0 0.0
    %1179 = vmatpush1.msra.mxu0 0.0
    %1180 = vmatprep.subr.mxu0 0.0
    %1181 = vmatpush1.msra.mxu0 0.0
    %1182 = vmatprep.subr.mxu0 0.0
    %1183 = vmatpush1.msra.mxu0 0.0
    %1184 = vmatprep.subr.mxu0 0.0
    %1185 = vmatpush1.msra.mxu0 0.0
    %1186 = vmatprep.subr.mxu0 0.0
    %1187 = vmatpush1.msra.mxu0 0.0
    %1188 = vmatprep.subr.mxu0 0.0
    %1189 = vmatpush1.msra.mxu0 0.0
    %1190 = vmatprep.subr.mxu0 0.0
    %1191 = vmatpush1.msra.mxu0 0.0
    %1192 = vmatprep.subr.mxu0 0.0
    %1193 = vmatpush1.msra.mxu0 0.0
    %1194 = vmatprep.subr.mxu0 0.0
    %1195 = vmatpush1.msra.mxu0 0.0
    %1196 = vmatprep.subr.mxu0 0.0
    %1197 = vmatpush1.msra.mxu0 0.0
    %1198 = vmatprep.mubr.f32.mxu0 0.0
    %v1199 = vand.u32 %v547, 4294901760
    %1200 = vmatmul.mubr.f32.gmra.mrb[0].mxu0 %v1199
    %v1201 = vpop.f32.mrb[0].mxu0
    %v1202 = vadd.f32 %v1115, %v1201
    %v1203 = vpop.f32.mrb[0].mxu0
    %1204 = vdwg.mxu0
    %v1205 = vmax.f32 %v1202, 0.0
    %v1206 = vld [vmem:[#allocation8] sm:$0xff]
    %v1207 = vld [vmem:[#allocation8 + $0x8] sm:$0xff]
    %v1208 = vld [vmem:[#allocation8 + $0x10] sm:$0xff]
    %v1209 = vld [vmem:[#allocation8 + $0x18] sm:$0xff]
    %v1210 = vld [vmem:[#allocation8 + $0x20] sm:$0xff]
    %v1211 = vld [vmem:[#allocation8 + $0x28] sm:$0xff]
    %v1212 = vld [vmem:[#allocation8 + $0x30] sm:$0xff]
    %v1213 = vld [vmem:[#allocation8 + $0x38] sm:$0xff]
    %v1214 = vld [vmem:[#allocation8 + $0x40] sm:$0xff]
    %v1215 = vld [vmem:[#allocation8 + $0x48] sm:$0xff]
    %v1216 = vld [vmem:[#allocation8 + $0x50] sm:$0xff]
    %v1217 = vld [vmem:[#allocation8 + $0x58] sm:$0xff]
    %v1218 = vld [vmem:[#allocation8 + $0x60] sm:$0xff]
    %v1219 = vld [vmem:[#allocation8 + $0x68] sm:$0xff]
    %v1220 = vld [vmem:[#allocation8 + $0x70] sm:$0xff]
    %v1221 = vld [vmem:[#allocation8 + $0x78] sm:$0xff]
    %1222 = vmatprep.subr.mxu0 0.0
    %v1223 = vand.u32 %v1206, 4294901760
    %1224 = vmatpush1.msra.mxu0 %v1223
    %1225 = vmatprep.subr.mxu0 0.0
    %v1226 = vand.u32 %v1207, 4294901760
    %1227 = vmatpush1.msra.mxu0 %v1226
    %1228 = vmatprep.subr.mxu0 0.0
    %v1229 = vand.u32 %v1208, 4294901760
    %1230 = vmatpush1.msra.mxu0 %v1229
    %1231 = vmatprep.subr.mxu0 0.0
    %v1232 = vand.u32 %v1209, 4294901760
    %1233 = vmatpush1.msra.mxu0 %v1232
    %1234 = vmatprep.subr.mxu0 0.0
    %v1235 = vand.u32 %v1210, 4294901760
    %1236 = vmatpush1.msra.mxu0 %v1235
    %1237 = vmatprep.subr.mxu0 0.0
    %v1238 = vand.u32 %v1211, 4294901760
    %1239 = vmatpush1.msra.mxu0 %v1238
    %1240 = vmatprep.subr.mxu0 0.0
    %v1241 = vand.u32 %v1212, 4294901760
    %1242 = vmatpush1.msra.mxu0 %v1241
    %1243 = vmatprep.subr.mxu0 0.0
    %v1244 = vand.u32 %v1213, 4294901760
    %1245 = vmatpush1.msra.mxu0 %v1244
    %1246 = vmatprep.subr.mxu0 0.0
    %v1247 = vand.u32 %v1214, 4294901760
    %1248 = vmatpush1.msra.mxu0 %v1247
    %1249 = vmatprep.subr.mxu0 0.0
    %v1250 = vand.u32 %v1215, 4294901760
    %1251 = vmatpush1.msra.mxu0 %v1250
    %1252 = vmatprep.subr.mxu0 0.0
    %v1253 = vand.u32 %v1216, 4294901760
    %1254 = vmatpush1.msra.mxu0 %v1253
    %1255 = vmatprep.subr.mxu0 0.0
    %v1256 = vand.u32 %v1217, 4294901760
    %1257 = vmatpush1.msra.mxu0 %v1256
    %1258 = vmatprep.subr.mxu0 0.0
    %v1259 = vand.u32 %v1218, 4294901760
    %1260 = vmatpush1.msra.mxu0 %v1259
    %1261 = vmatprep.subr.mxu0 0.0
    %v1262 = vand.u32 %v1219, 4294901760
    %1263 = vmatpush1.msra.mxu0 %v1262
    %1264 = vmatprep.subr.mxu0 0.0
    %v1265 = vand.u32 %v1220, 4294901760
    %1266 = vmatpush1.msra.mxu0 %v1265
    %1267 = vmatprep.subr.mxu0 0.0
    %v1268 = vand.u32 %v1221, 4294901760
    %1269 = vmatpush1.msra.mxu0 %v1268
    %1270 = vmatprep.subr.mxu0 0.0
    %1271 = vmatpush1.msra.mxu0 0.0
    %1272 = vmatprep.subr.mxu0 0.0
    %1273 = vmatpush1.msra.mxu0 0.0
    %1274 = vmatprep.subr.mxu0 0.0
    %1275 = vmatpush1.msra.mxu0 0.0
    %1276 = vmatprep.subr.mxu0 0.0
    %1277 = vmatpush1.msra.mxu0 0.0
    %1278 = vmatprep.subr.mxu0 0.0
    %1279 = vmatpush1.msra.mxu0 0.0
    %1280 = vmatprep.subr.mxu0 0.0
    %1281 = vmatpush1.msra.mxu0 0.0
    %1282 = vmatprep.subr.mxu0 0.0
    %1283 = vmatpush1.msra.mxu0 0.0
    %1284 = vmatprep.subr.mxu0 0.0
    %1285 = vmatpush1.msra.mxu0 0.0
    %1286 = vmatprep.subr.mxu0 0.0
    %1287 = vmatpush1.msra.mxu0 0.0
    %1288 = vmatprep.subr.mxu0 0.0
    %1289 = vmatpush1.msra.mxu0 0.0
    %1290 = vmatprep.subr.mxu0 0.0
    %1291 = vmatpush1.msra.mxu0 0.0
    %1292 = vmatprep.subr.mxu0 0.0
    %1293 = vmatpush1.msra.mxu0 0.0
    %1294 = vmatprep.subr.mxu0 0.0
    %1295 = vmatpush1.msra.mxu0 0.0
    %1296 = vmatprep.subr.mxu0 0.0
    %1297 = vmatpush1.msra.mxu0 0.0
    %1298 = vmatprep.subr.mxu0 0.0
    %1299 = vmatpush1.msra.mxu0 0.0
    %1300 = vmatprep.subr.mxu0 0.0
    %1301 = vmatpush1.msra.mxu0 0.0
    %1302 = vmatprep.mubr.f32.mxu0 0.0
    %v1303 = vand.u32 %v1205, 4294901760
    %v1304 = vsub.f32 %v1205, %v1303
    %v1305 = vand.u32 %v1304, 4294901760
    %v1306 = vsub.f32 %v1304, %v1305
    %v1307 = vand.u32 %v1306, 4294901760
    %1308 = vmatmul.mubr.f32.gmra.mrb[0].mxu0 %v1307
    %v1309 = vpop.f32.mrb[0].mxu0
    %v1310 = vadd.f32 0.0, %v1309
    %v1311 = vpop.f32.mrb[0].mxu0
    %1312 = vdwg.mxu0
    %1313 = vmatprep.subr.mxu0 0.0
    %v1314 = vand.u32 %v1206, 4294901760
    %v1315 = vsub.f32 %v1206, %v1314
    %v1316 = vand.u32 %v1315, 4294901760
    %v1317 = vsub.f32 %v1315, %v1316
    %v1318 = vand.u32 %v1317, 4294901760
    %1319 = vmatpush1.msra.mxu0 %v1318
    %1320 = vmatprep.subr.mxu0 0.0
    %v1321 = vand.u32 %v1207, 4294901760
    %v1322 = vsub.f32 %v1207, %v1321
    %v1323 = vand.u32 %v1322, 4294901760
    %v1324 = vsub.f32 %v1322, %v1323
    %v1325 = vand.u32 %v1324, 4294901760
    %1326 = vmatpush1.msra.mxu0 %v1325
    %1327 = vmatprep.subr.mxu0 0.0
    %v1328 = vand.u32 %v1208, 4294901760
    %v1329 = vsub.f32 %v1208, %v1328
    %v1330 = vand.u32 %v1329, 4294901760
    %v1331 = vsub.f32 %v1329, %v1330
    %v1332 = vand.u32 %v1331, 4294901760
    %1333 = vmatpush1.msra.mxu0 %v1332
    %1334 = vmatprep.subr.mxu0 0.0
    %v1335 = vand.u32 %v1209, 4294901760
    %v1336 = vsub.f32 %v1209, %v1335
    %v1337 = vand.u32 %v1336, 4294901760
    %v1338 = vsub.f32 %v1336, %v1337
    %v1339 = vand.u32 %v1338, 4294901760
    %1340 = vmatpush1.msra.mxu0 %v1339
    %1341 = vmatprep.subr.mxu0 0.0
    %v1342 = vand.u32 %v1210, 4294901760
    %v1343 = vsub.f32 %v1210, %v1342
    %v1344 = vand.u32 %v1343, 4294901760
    %v1345 = vsub.f32 %v1343, %v1344
    %v1346 = vand.u32 %v1345, 4294901760
    %1347 = vmatpush1.msra.mxu0 %v1346
    %1348 = vmatprep.subr.mxu0 0.0
    %v1349 = vand.u32 %v1211, 4294901760
    %v1350 = vsub.f32 %v1211, %v1349
    %v1351 = vand.u32 %v1350, 4294901760
    %v1352 = vsub.f32 %v1350, %v1351
    %v1353 = vand.u32 %v1352, 4294901760
    %1354 = vmatpush1.msra.mxu0 %v1353
    %1355 = vmatprep.subr.mxu0 0.0
    %v1356 = vand.u32 %v1212, 4294901760
    %v1357 = vsub.f32 %v1212, %v1356
    %v1358 = vand.u32 %v1357, 4294901760
    %v1359 = vsub.f32 %v1357, %v1358
    %v1360 = vand.u32 %v1359, 4294901760
    %1361 = vmatpush1.msra.mxu0 %v1360
    %1362 = vmatprep.subr.mxu0 0.0
    %v1363 = vand.u32 %v1213, 4294901760
    %v1364 = vsub.f32 %v1213, %v1363
    %v1365 = vand.u32 %v1364, 4294901760
    %v1366 = vsub.f32 %v1364, %v1365
    %v1367 = vand.u32 %v1366, 4294901760
    %1368 = vmatpush1.msra.mxu0 %v1367
    %1369 = vmatprep.subr.mxu0 0.0
    %v1370 = vand.u32 %v1214, 4294901760
    %v1371 = vsub.f32 %v1214, %v1370
    %v1372 = vand.u32 %v1371, 4294901760
    %v1373 = vsub.f32 %v1371, %v1372
    %v1374 = vand.u32 %v1373, 4294901760
    %1375 = vmatpush1.msra.mxu0 %v1374
    %1376 = vmatprep.subr.mxu0 0.0
    %v1377 = vand.u32 %v1215, 4294901760
    %v1378 = vsub.f32 %v1215, %v1377
    %v1379 = vand.u32 %v1378, 4294901760
    %v1380 = vsub.f32 %v1378, %v1379
    %v1381 = vand.u32 %v1380, 4294901760
    %1382 = vmatpush1.msra.mxu0 %v1381
    %1383 = vmatprep.subr.mxu0 0.0
    %v1384 = vand.u32 %v1216, 4294901760
    %v1385 = vsub.f32 %v1216, %v1384
    %v1386 = vand.u32 %v1385, 4294901760
    %v1387 = vsub.f32 %v1385, %v1386
    %v1388 = vand.u32 %v1387, 4294901760
    %1389 = vmatpush1.msra.mxu0 %v1388
    %1390 = vmatprep.subr.mxu0 0.0
    %v1391 = vand.u32 %v1217, 4294901760
    %v1392 = vsub.f32 %v1217, %v1391
    %v1393 = vand.u32 %v1392, 4294901760
    %v1394 = vsub.f32 %v1392, %v1393
    %v1395 = vand.u32 %v1394, 4294901760
    %1396 = vmatpush1.msra.mxu0 %v1395
    %1397 = vmatprep.subr.mxu0 0.0
    %v1398 = vand.u32 %v1218, 4294901760
    %v1399 = vsub.f32 %v1218, %v1398
    %v1400 = vand.u32 %v1399, 4294901760
    %v1401 = vsub.f32 %v1399, %v1400
    %v1402 = vand.u32 %v1401, 4294901760
    %1403 = vmatpush1.msra.mxu0 %v1402
    %1404 = vmatprep.subr.mxu0 0.0
    %v1405 = vand.u32 %v1219, 4294901760
    %v1406 = vsub.f32 %v1219, %v1405
    %v1407 = vand.u32 %v1406, 4294901760
    %v1408 = vsub.f32 %v1406, %v1407
    %v1409 = vand.u32 %v1408, 4294901760
    %1410 = vmatpush1.msra.mxu0 %v1409
    %1411 = vmatprep.subr.mxu0 0.0
    %v1412 = vand.u32 %v1220, 4294901760
    %v1413 = vsub.f32 %v1220, %v1412
    %v1414 = vand.u32 %v1413, 4294901760
    %v1415 = vsub.f32 %v1413, %v1414
    %v1416 = vand.u32 %v1415, 4294901760
    %1417 = vmatpush1.msra.mxu0 %v1416
    %1418 = vmatprep.subr.mxu0 0.0
    %v1419 = vand.u32 %v1221, 4294901760
    %v1420 = vsub.f32 %v1221, %v1419
    %v1421 = vand.u32 %v1420, 4294901760
    %v1422 = vsub.f32 %v1420, %v1421
    %v1423 = vand.u32 %v1422, 4294901760
    %1424 = vmatpush1.msra.mxu0 %v1423
    %1425 = vmatprep.subr.mxu0 0.0
    %1426 = vmatpush1.msra.mxu0 0.0
    %1427 = vmatprep.subr.mxu0 0.0
    %1428 = vmatpush1.msra.mxu0 0.0
    %1429 = vmatprep.subr.mxu0 0.0
    %1430 = vmatpush1.msra.mxu0 0.0
    %1431 = vmatprep.subr.mxu0 0.0
    %1432 = vmatpush1.msra.mxu0 0.0
    %1433 = vmatprep.subr.mxu0 0.0
    %1434 = vmatpush1.msra.mxu0 0.0
    %1435 = vmatprep.subr.mxu0 0.0
    %1436 = vmatpush1.msra.mxu0 0.0
    %1437 = vmatprep.subr.mxu0 0.0
    %1438 = vmatpush1.msra.mxu0 0.0
    %1439 = vmatprep.subr.mxu0 0.0
    %1440 = vmatpush1.msra.mxu0 0.0
    %1441 = vmatprep.subr.mxu0 0.0
    %1442 = vmatpush1.msra.mxu0 0.0
    %1443 = vmatprep.subr.mxu0 0.0
    %1444 = vmatpush1.msra.mxu0 0.0
    %1445 = vmatprep.subr.mxu0 0.0
    %1446 = vmatpush1.msra.mxu0 0.0
    %1447 = vmatprep.subr.mxu0 0.0
    %1448 = vmatpush1.msra.mxu0 0.0
    %1449 = vmatprep.subr.mxu0 0.0
    %1450 = vmatpush1.msra.mxu0 0.0
    %1451 = vmatprep.subr.mxu0 0.0
    %1452 = vmatpush1.msra.mxu0 0.0
    %1453 = vmatprep.subr.mxu0 0.0
    %1454 = vmatpush1.msra.mxu0 0.0
    %1455 = vmatprep.subr.mxu0 0.0
    %1456 = vmatpush1.msra.mxu0 0.0
    %1457 = vmatprep.mubr.f32.mxu0 0.0
    %v1458 = vand.u32 %v1205, 4294901760
    %1459 = vmatmul.mubr.f32.gmra.mrb[0].mxu0 %v1458
    %v1460 = vpop.f32.mrb[0].mxu0
    %v1461 = vadd.f32 %v1310, %v1460
    %v1462 = vpop.f32.mrb[0].mxu0
    %1463 = vdwg.mxu0
    %1464 = vmatprep.subr.mxu0 0.0
    %v1465 = vand.u32 %v1206, 4294901760
    %v1466 = vsub.f32 %v1206, %v1465
    %1467 = vmatpush1.msra.mxu0 %v1466
    %1468 = vmatprep.subr.mxu0 0.0
    %v1469 = vand.u32 %v1207, 4294901760
    %v1470 = vsub.f32 %v1207, %v1469
    %1471 = vmatpush1.msra.mxu0 %v1470
    %1472 = vmatprep.subr.mxu0 0.0
    %v1473 = vand.u32 %v1208, 4294901760
    %v1474 = vsub.f32 %v1208, %v1473
    %1475 = vmatpush1.msra.mxu0 %v1474
    %1476 = vmatprep.subr.mxu0 0.0
    %v1477 = vand.u32 %v1209, 4294901760
    %v1478 = vsub.f32 %v1209, %v1477
    %1479 = vmatpush1.msra.mxu0 %v1478
    %1480 = vmatprep.subr.mxu0 0.0
    %v1481 = vand.u32 %v1210, 4294901760
    %v1482 = vsub.f32 %v1210, %v1481
    %1483 = vmatpush1.msra.mxu0 %v1482
    %1484 = vmatprep.subr.mxu0 0.0
    %v1485 = vand.u32 %v1211, 4294901760
    %v1486 = vsub.f32 %v1211, %v1485
    %1487 = vmatpush1.msra.mxu0 %v1486
    %1488 = vmatprep.subr.mxu0 0.0
    %v1489 = vand.u32 %v1212, 4294901760
    %v1490 = vsub.f32 %v1212, %v1489
    %1491 = vmatpush1.msra.mxu0 %v1490
    %1492 = vmatprep.subr.mxu0 0.0
    %v1493 = vand.u32 %v1213, 4294901760
    %v1494 = vsub.f32 %v1213, %v1493
    %1495 = vmatpush1.msra.mxu0 %v1494
    %1496 = vmatprep.subr.mxu0 0.0
    %v1497 = vand.u32 %v1214, 4294901760
    %v1498 = vsub.f32 %v1214, %v1497
    %1499 = vmatpush1.msra.mxu0 %v1498
    %1500 = vmatprep.subr.mxu0 0.0
    %v1501 = vand.u32 %v1215, 4294901760
    %v1502 = vsub.f32 %v1215, %v1501
    %1503 = vmatpush1.msra.mxu0 %v1502
    %1504 = vmatprep.subr.mxu0 0.0
    %v1505 = vand.u32 %v1216, 4294901760
    %v1506 = vsub.f32 %v1216, %v1505
    %1507 = vmatpush1.msra.mxu0 %v1506
    %1508 = vmatprep.subr.mxu0 0.0
    %v1509 = vand.u32 %v1217, 4294901760
    %v1510 = vsub.f32 %v1217, %v1509
    %1511 = vmatpush1.msra.mxu0 %v1510
    %1512 = vmatprep.subr.mxu0 0.0
    %v1513 = vand.u32 %v1218, 4294901760
    %v1514 = vsub.f32 %v1218, %v1513
    %1515 = vmatpush1.msra.mxu0 %v1514
    %1516 = vmatprep.subr.mxu0 0.0
    %v1517 = vand.u32 %v1219, 4294901760
    %v1518 = vsub.f32 %v1219, %v1517
    %1519 = vmatpush1.msra.mxu0 %v1518
    %1520 = vmatprep.subr.mxu0 0.0
    %v1521 = vand.u32 %v1220, 4294901760
    %v1522 = vsub.f32 %v1220, %v1521
    %1523 = vmatpush1.msra.mxu0 %v1522
    %1524 = vmatprep.subr.mxu0 0.0
    %v1525 = vand.u32 %v1221, 4294901760
    %v1526 = vsub.f32 %v1221, %v1525
    %1527 = vmatpush1.msra.mxu0 %v1526
    %1528 = vmatprep.subr.mxu0 0.0
    %1529 = vmatpush1.msra.mxu0 0.0
    %1530 = vmatprep.subr.mxu0 0.0
    %1531 = vmatpush1.msra.mxu0 0.0
    %1532 = vmatprep.subr.mxu0 0.0
    %1533 = vmatpush1.msra.mxu0 0.0
    %1534 = vmatprep.subr.mxu0 0.0
    %1535 = vmatpush1.msra.mxu0 0.0
    %1536 = vmatprep.subr.mxu0 0.0
    %1537 = vmatpush1.msra.mxu0 0.0
    %1538 = vmatprep.subr.mxu0 0.0
    %1539 = vmatpush1.msra.mxu0 0.0
    %1540 = vmatprep.subr.mxu0 0.0
    %1541 = vmatpush1.msra.mxu0 0.0
    %1542 = vmatprep.subr.mxu0 0.0
    %1543 = vmatpush1.msra.mxu0 0.0
    %1544 = vmatprep.subr.mxu0 0.0
    %1545 = vmatpush1.msra.mxu0 0.0
    %1546 = vmatprep.subr.mxu0 0.0
    %1547 = vmatpush1.msra.mxu0 0.0
    %1548 = vmatprep.subr.mxu0 0.0
    %1549 = vmatpush1.msra.mxu0 0.0
    %1550 = vmatprep.subr.mxu0 0.0
    %1551 = vmatpush1.msra.mxu0 0.0
    %1552 = vmatprep.subr.mxu0 0.0
    %1553 = vmatpush1.msra.mxu0 0.0
    %1554 = vmatprep.subr.mxu0 0.0
    %1555 = vmatpush1.msra.mxu0 0.0
    %1556 = vmatprep.subr.mxu0 0.0
    %1557 = vmatpush1.msra.mxu0 0.0
    %1558 = vmatprep.subr.mxu0 0.0
    %1559 = vmatpush1.msra.mxu0 0.0
    %1560 = vmatprep.mubr.f32.mxu0 0.0
    %v1561 = vand.u32 %v1205, 4294901760
    %v1562 = vsub.f32 %v1205, %v1561
    %1563 = vmatmul.mubr.f32.gmra.mrb[0].mxu0 %v1562
    %v1564 = vpop.f32.mrb[0].mxu0
    %v1565 = vadd.f32 %v1461, %v1564
    %v1566 = vpop.f32.mrb[0].mxu0
    %1567 = vdwg.mxu0
    %1568 = vmatprep.subr.mxu0 0.0
    %v1569 = vand.u32 %v1206, 4294901760
    %1570 = vmatpush1.msra.mxu0 %v1569
    %1571 = vmatprep.subr.mxu0 0.0
    %v1572 = vand.u32 %v1207, 4294901760
    %1573 = vmatpush1.msra.mxu0 %v1572
    %1574 = vmatprep.subr.mxu0 0.0
    %v1575 = vand.u32 %v1208, 4294901760
    %1576 = vmatpush1.msra.mxu0 %v1575
    %1577 = vmatprep.subr.mxu0 0.0
    %v1578 = vand.u32 %v1209, 4294901760
    %1579 = vmatpush1.msra.mxu0 %v1578
    %1580 = vmatprep.subr.mxu0 0.0
    %v1581 = vand.u32 %v1210, 4294901760
    %1582 = vmatpush1.msra.mxu0 %v1581
    %1583 = vmatprep.subr.mxu0 0.0
    %v1584 = vand.u32 %v1211, 4294901760
    %1585 = vmatpush1.msra.mxu0 %v1584
    %1586 = vmatprep.subr.mxu0 0.0
    %v1587 = vand.u32 %v1212, 4294901760
    %1588 = vmatpush1.msra.mxu0 %v1587
    %1589 = vmatprep.subr.mxu0 0.0
    %v1590 = vand.u32 %v1213, 4294901760
    %1591 = vmatpush1.msra.mxu0 %v1590
    %1592 = vmatprep.subr.mxu0 0.0
    %v1593 = vand.u32 %v1214, 4294901760
    %1594 = vmatpush1.msra.mxu0 %v1593
    %1595 = vmatprep.subr.mxu0 0.0
    %v1596 = vand.u32 %v1215, 4294901760
    %1597 = vmatpush1.msra.mxu0 %v1596
    %1598 = vmatprep.subr.mxu0 0.0
    %v1599 = vand.u32 %v1216, 4294901760
    %1600 = vmatpush1.msra.mxu0 %v1599
    %1601 = vmatprep.subr.mxu0 0.0
    %v1602 = vand.u32 %v1217, 4294901760
    %1603 = vmatpush1.msra.mxu0 %v1602
    %1604 = vmatprep.subr.mxu0 0.0
    %v1605 = vand.u32 %v1218, 4294901760
    %1606 = vmatpush1.msra.mxu0 %v1605
    %1607 = vmatprep.subr.mxu0 0.0
    %v1608 = vand.u32 %v1219, 4294901760
    %1609 = vmatpush1.msra.mxu0 %v1608
    %1610 = vmatprep.subr.mxu0 0.0
    %v1611 = vand.u32 %v1220, 4294901760
    %1612 = vmatpush1.msra.mxu0 %v1611
    %1613 = vmatprep.subr.mxu0 0.0
    %v1614 = vand.u32 %v1221, 4294901760
    %1615 = vmatpush1.msra.mxu0 %v1614
    %1616 = vmatprep.subr.mxu0 0.0
    %1617 = vmatpush1.msra.mxu0 0.0
    %1618 = vmatprep.subr.mxu0 0.0
    %1619 = vmatpush1.msra.mxu0 0.0
    %1620 = vmatprep.subr.mxu0 0.0
    %1621 = vmatpush1.msra.mxu0 0.0
    %1622 = vmatprep.subr.mxu0 0.0
    %1623 = vmatpush1.msra.mxu0 0.0
    %1624 = vmatprep.subr.mxu0 0.0
    %1625 = vmatpush1.msra.mxu0 0.0
    %1626 = vmatprep.subr.mxu0 0.0
    %1627 = vmatpush1.msra.mxu0 0.0
    %1628 = vmatprep.subr.mxu0 0.0
    %1629 = vmatpush1.msra.mxu0 0.0
    %1630 = vmatprep.subr.mxu0 0.0
    %1631 = vmatpush1.msra.mxu0 0.0
    %1632 = vmatprep.subr.mxu0 0.0
    %1633 = vmatpush1.msra.mxu0 0.0
    %1634 = vmatprep.subr.mxu0 0.0
    %1635 = vmatpush1.msra.mxu0 0.0
    %1636 = vmatprep.subr.mxu0 0.0
    %1637 = vmatpush1.msra.mxu0 0.0
    %1638 = vmatprep.subr.mxu0 0.0
    %1639 = vmatpush1.msra.mxu0 0.0
    %1640 = vmatprep.subr.mxu0 0.0
    %1641 = vmatpush1.msra.mxu0 0.0
    %1642 = vmatprep.subr.mxu0 0.0
    %1643 = vmatpush1.msra.mxu0 0.0
    %1644 = vmatprep.subr.mxu0 0.0
    %1645 = vmatpush1.msra.mxu0 0.0
    %1646 = vmatprep.subr.mxu0 0.0
    %1647 = vmatpush1.msra.mxu0 0.0
    %1648 = vmatprep.mubr.f32.mxu0 0.0
    %v1649 = vand.u32 %v1205, 4294901760
    %v1650 = vsub.f32 %v1205, %v1649
    %v1651 = vand.u32 %v1650, 4294901760
    %1652 = vmatmul.mubr.f32.gmra.mrb[0].mxu0 %v1651
    %v1653 = vpop.f32.mrb[0].mxu0
    %v1654 = vadd.f32 %v1565, %v1653
    %v1655 = vpop.f32.mrb[0].mxu0
    %1656 = vdwg.mxu0
    %1657 = vmatprep.subr.mxu0 0.0
    %v1658 = vand.u32 %v1206, 4294901760
    %v1659 = vsub.f32 %v1206, %v1658
    %v1660 = vand.u32 %v1659, 4294901760
    %1661 = vmatpush1.msra.mxu0 %v1660
    %1662 = vmatprep.subr.mxu0 0.0
    %v1663 = vand.u32 %v1207, 4294901760
    %v1664 = vsub.f32 %v1207, %v1663
    %v1665 = vand.u32 %v1664, 4294901760
    %1666 = vmatpush1.msra.mxu0 %v1665
    %1667 = vmatprep.subr.mxu0 0.0
    %v1668 = vand.u32 %v1208, 4294901760
    %v1669 = vsub.f32 %v1208, %v1668
    %v1670 = vand.u32 %v1669, 4294901760
    %1671 = vmatpush1.msra.mxu0 %v1670
    %1672 = vmatprep.subr.mxu0 0.0
    %v1673 = vand.u32 %v1209, 4294901760
    %v1674 = vsub.f32 %v1209, %v1673
    %v1675 = vand.u32 %v1674, 4294901760
    %1676 = vmatpush1.msra.mxu0 %v1675
    %1677 = vmatprep.subr.mxu0 0.0
    %v1678 = vand.u32 %v1210, 4294901760
    %v1679 = vsub.f32 %v1210, %v1678
    %v1680 = vand.u32 %v1679, 4294901760
    %1681 = vmatpush1.msra.mxu0 %v1680
    %1682 = vmatprep.subr.mxu0 0.0
    %v1683 = vand.u32 %v1211, 4294901760
    %v1684 = vsub.f32 %v1211, %v1683
    %v1685 = vand.u32 %v1684, 4294901760
    %1686 = vmatpush1.msra.mxu0 %v1685
    %1687 = vmatprep.subr.mxu0 0.0
    %v1688 = vand.u32 %v1212, 4294901760
    %v1689 = vsub.f32 %v1212, %v1688
    %v1690 = vand.u32 %v1689, 4294901760
    %1691 = vmatpush1.msra.mxu0 %v1690
    %1692 = vmatprep.subr.mxu0 0.0
    %v1693 = vand.u32 %v1213, 4294901760
    %v1694 = vsub.f32 %v1213, %v1693
    %v1695 = vand.u32 %v1694, 4294901760
    %1696 = vmatpush1.msra.mxu0 %v1695
    %1697 = vmatprep.subr.mxu0 0.0
    %v1698 = vand.u32 %v1214, 4294901760
    %v1699 = vsub.f32 %v1214, %v1698
    %v1700 = vand.u32 %v1699, 4294901760
    %1701 = vmatpush1.msra.mxu0 %v1700
    %1702 = vmatprep.subr.mxu0 0.0
    %v1703 = vand.u32 %v1215, 4294901760
    %v1704 = vsub.f32 %v1215, %v1703
    %v1705 = vand.u32 %v1704, 4294901760
    %1706 = vmatpush1.msra.mxu0 %v1705
    %1707 = vmatprep.subr.mxu0 0.0
    %v1708 = vand.u32 %v1216, 4294901760
    %v1709 = vsub.f32 %v1216, %v1708
    %v1710 = vand.u32 %v1709, 4294901760
    %1711 = vmatpush1.msra.mxu0 %v1710
    %1712 = vmatprep.subr.mxu0 0.0
    %v1713 = vand.u32 %v1217, 4294901760
    %v1714 = vsub.f32 %v1217, %v1713
    %v1715 = vand.u32 %v1714, 4294901760
    %1716 = vmatpush1.msra.mxu0 %v1715
    %1717 = vmatprep.subr.mxu0 0.0
    %v1718 = vand.u32 %v1218, 4294901760
    %v1719 = vsub.f32 %v1218, %v1718
    %v1720 = vand.u32 %v1719, 4294901760
    %1721 = vmatpush1.msra.mxu0 %v1720
    %1722 = vmatprep.subr.mxu0 0.0
    %v1723 = vand.u32 %v1219, 4294901760
    %v1724 = vsub.f32 %v1219, %v1723
    %v1725 = vand.u32 %v1724, 4294901760
    %1726 = vmatpush1.msra.mxu0 %v1725
    %1727 = vmatprep.subr.mxu0 0.0
    %v1728 = vand.u32 %v1220, 4294901760
    %v1729 = vsub.f32 %v1220, %v1728
    %v1730 = vand.u32 %v1729, 4294901760
    %1731 = vmatpush1.msra.mxu0 %v1730
    %1732 = vmatprep.subr.mxu0 0.0
    %v1733 = vand.u32 %v1221, 4294901760
    %v1734 = vsub.f32 %v1221, %v1733
    %v1735 = vand.u32 %v1734, 4294901760
    %1736 = vmatpush1.msra.mxu0 %v1735
    %1737 = vmatprep.subr.mxu0 0.0
    %1738 = vmatpush1.msra.mxu0 0.0
    %1739 = vmatprep.subr.mxu0 0.0
    %1740 = vmatpush1.msra.mxu0 0.0
    %1741 = vmatprep.subr.mxu0 0.0
    %1742 = vmatpush1.msra.mxu0 0.0
    %1743 = vmatprep.subr.mxu0 0.0
    %1744 = vmatpush1.msra.mxu0 0.0
    %1745 = vmatprep.subr.mxu0 0.0
    %1746 = vmatpush1.msra.mxu0 0.0
    %1747 = vmatprep.subr.mxu0 0.0
    %1748 = vmatpush1.msra.mxu0 0.0
    %1749 = vmatprep.subr.mxu0 0.0
    %1750 = vmatpush1.msra.mxu0 0.0
    %1751 = vmatprep.subr.mxu0 0.0
    %1752 = vmatpush1.msra.mxu0 0.0
    %1753 = vmatprep.subr.mxu0 0.0
    %1754 = vmatpush1.msra.mxu0 0.0
    %1755 = vmatprep.subr.mxu0 0.0
    %1756 = vmatpush1.msra.mxu0 0.0
    %1757 = vmatprep.subr.mxu0 0.0
    %1758 = vmatpush1.msra.mxu0 0.0
    %1759 = vmatprep.subr.mxu0 0.0
    %1760 = vmatpush1.msra.mxu0 0.0
    %1761 = vmatprep.subr.mxu0 0.0
    %1762 = vmatpush1.msra.mxu0 0.0
    %1763 = vmatprep.subr.mxu0 0.0
    %1764 = vmatpush1.msra.mxu0 0.0
    %1765 = vmatprep.subr.mxu0 0.0
    %1766 = vmatpush1.msra.mxu0 0.0
    %1767 = vmatprep.subr.mxu0 0.0
    %1768 = vmatpush1.msra.mxu0 0.0
    %1769 = vmatprep.mubr.f32.mxu0 0.0
    %v1770 = vand.u32 %v1205, 4294901760
    %1771 = vmatmul.mubr.f32.gmra.mrb[0].mxu0 %v1770
    %v1772 = vpop.f32.mrb[0].mxu0
    %v1773 = vadd.f32 %v1654, %v1772
    %v1774 = vpop.f32.mrb[0].mxu0
    %1775 = vdwg.mxu0
    %1776 = vmatprep.subr.mxu0 0.0
    %v1777 = vand.u32 %v1206, 4294901760
    %1778 = vmatpush1.msra.mxu0 %v1777
    %1779 = vmatprep.subr.mxu0 0.0
    %v1780 = vand.u32 %v1207, 4294901760
    %1781 = vmatpush1.msra.mxu0 %v1780
    %1782 = vmatprep.subr.mxu0 0.0
    %v1783 = vand.u32 %v1208, 4294901760
    %1784 = vmatpush1.msra.mxu0 %v1783
    %1785 = vmatprep.subr.mxu0 0.0
    %v1786 = vand.u32 %v1209, 4294901760
    %1787 = vmatpush1.msra.mxu0 %v1786
    %1788 = vmatprep.subr.mxu0 0.0
    %v1789 = vand.u32 %v1210, 4294901760
    %1790 = vmatpush1.msra.mxu0 %v1789
    %1791 = vmatprep.subr.mxu0 0.0
    %v1792 = vand.u32 %v1211, 4294901760
    %1793 = vmatpush1.msra.mxu0 %v1792
    %1794 = vmatprep.subr.mxu0 0.0
    %v1795 = vand.u32 %v1212, 4294901760
    %1796 = vmatpush1.msra.mxu0 %v1795
    %1797 = vmatprep.subr.mxu0 0.0
    %v1798 = vand.u32 %v1213, 4294901760
    %1799 = vmatpush1.msra.mxu0 %v1798
    %1800 = vmatprep.subr.mxu0 0.0
    %v1801 = vand.u32 %v1214, 4294901760
    %1802 = vmatpush1.msra.mxu0 %v1801
    %1803 = vmatprep.subr.mxu0 0.0
    %v1804 = vand.u32 %v1215, 4294901760
    %1805 = vmatpush1.msra.mxu0 %v1804
    %1806 = vmatprep.subr.mxu0 0.0
    %v1807 = vand.u32 %v1216, 4294901760
    %1808 = vmatpush1.msra.mxu0 %v1807
    %1809 = vmatprep.subr.mxu0 0.0
    %v1810 = vand.u32 %v1217, 4294901760
    %1811 = vmatpush1.msra.mxu0 %v1810
    %1812 = vmatprep.subr.mxu0 0.0
    %v1813 = vand.u32 %v1218, 4294901760
    %1814 = vmatpush1.msra.mxu0 %v1813
    %1815 = vmatprep.subr.mxu0 0.0
    %v1816 = vand.u32 %v1219, 4294901760
    %1817 = vmatpush1.msra.mxu0 %v1816
    %1818 = vmatprep.subr.mxu0 0.0
    %v1819 = vand.u32 %v1220, 4294901760
    %1820 = vmatpush1.msra.mxu0 %v1819
    %1821 = vmatprep.subr.mxu0 0.0
    %v1822 = vand.u32 %v1221, 4294901760
    %1823 = vmatpush1.msra.mxu0 %v1822
    %1824 = vmatprep.subr.mxu0 0.0
    %1825 = vmatpush1.msra.mxu0 0.0
    %1826 = vmatprep.subr.mxu0 0.0
    %1827 = vmatpush1.msra.mxu0 0.0
    %1828 = vmatprep.subr.mxu0 0.0
    %1829 = vmatpush1.msra.mxu0 0.0
    %1830 = vmatprep.subr.mxu0 0.0
    %1831 = vmatpush1.msra.mxu0 0.0
    %1832 = vmatprep.subr.mxu0 0.0
    %1833 = vmatpush1.msra.mxu0 0.0
    %1834 = vmatprep.subr.mxu0 0.0
    %1835 = vmatpush1.msra.mxu0 0.0
    %1836 = vmatprep.subr.mxu0 0.0
    %1837 = vmatpush1.msra.mxu0 0.0
    %1838 = vmatprep.subr.mxu0 0.0
    %1839 = vmatpush1.msra.mxu0 0.0
    %1840 = vmatprep.subr.mxu0 0.0
    %1841 = vmatpush1.msra.mxu0 0.0
    %1842 = vmatprep.subr.mxu0 0.0
    %1843 = vmatpush1.msra.mxu0 0.0
    %1844 = vmatprep.subr.mxu0 0.0
    %1845 = vmatpush1.msra.mxu0 0.0
    %1846 = vmatprep.subr.mxu0 0.0
    %1847 = vmatpush1.msra.mxu0 0.0
    %1848 = vmatprep.subr.mxu0 0.0
    %1849 = vmatpush1.msra.mxu0 0.0
    %1850 = vmatprep.subr.mxu0 0.0
    %1851 = vmatpush1.msra.mxu0 0.0
    %1852 = vmatprep.subr.mxu0 0.0
    %1853 = vmatpush1.msra.mxu0 0.0
    %1854 = vmatprep.subr.mxu0 0.0
    %1855 = vmatpush1.msra.mxu0 0.0
    %1856 = vmatprep.mubr.f32.mxu0 0.0
    %v1857 = vand.u32 %v1205, 4294901760
    %1858 = vmatmul.mubr.f32.gmra.mrb[0].mxu0 %v1857
    %v1859 = vpop.f32.mrb[0].mxu0
    %v1860 = vadd.f32 %v1773, %v1859
    %v1861 = vpop.f32.mrb[0].mxu0
    %1862 = vdwg.mxu0
    %v1863 = vlaneseq
    %v1864 = vand.u32 %v1863, 127
    %vm1865 = vcmp.lt.s32.totalorder %v1864, 4
    %v1866 = vsel %vm1865, 1, 0
    %vm1867 = vcmp.eq.s32.totalorder %v1866, 1
    %v1868 = vsel %vm1867, %v1860, -inf
    %1869 = vmax.xlane.f32.xlu0 %v1868
    %v1870 = vpop.xlane.xlu0 %1869
    %v1871 = vsub.f32 %v1868, %v1870
    %v1872 = vmul.f32 %v1871, 1.442695
    %v1873 = vpow.pop %v1872
    %1874 = vadd.xlane.f32.xlu0 %v1873
    %v1875 = vpop.xlane.xlu0 %1874
    %v1876 = vrcp.pop %v1875
    %v1877 = vmul.f32 %v1873, %v1876
    %v1878 = vsel %vm1867, %v1877, %v1860
    %1879 = vst [vmem:[#allocation10] sm:$0xff] %v1878
    // Predicated region
    $region38: #{tpu_custom_call.1} parent=1 // pred_check
      _
    $region39: #{tpu_custom_call.1} parent=1 // pred_check_branch
      %1881 = sbr.rel (0) target = $region41
    $region40: #{tpu_custom_call.1} parent=1 // pred_region
      %s1883 = ssub.s32 128, 128
      %1884 = vsyncadd [#allocation4], %s1883
      %s1886 = sshll.u32 [#allocation10], 4
      %s1887 = int_to_ptr.vmem [resolvable:$true] %s1886
      %1889 = dma.vmem_to_hbm [thread:$0]  %s1887, 128, %s5, [#allocation4]
    $region41: #{tpu_custom_call.1} parent=1 // pred_fallthru
      _
    // Predicated region
    $region42: #{tpu_custom_call.1} parent=1 // pred_check
      _
    $region43: #{tpu_custom_call.1} parent=1 // pred_check_branch
      %1891 = sbr.rel (0) target = $region45
    $region44: #{tpu_custom_call.1} parent=1 // pred_region
      %1892 = dma.done [#allocation4], 128
    $region45: #{tpu_custom_call.1} parent=1 // pred_fallthru
      _
    %1893 = vsyncpa [#allocation3], 1
    %1894 = vsyncpa [#allocation6], 1
    %1895 = vsyncpa [#allocation9], 1
    %1896 = vsyncpa [#allocation4], 1

</llo_original>
